<compile_context>
chip_gen: v7x
topology: tpu7x:2x2x1
jax: 0.10.0
libtpu: 0.0.40
codegen_flags: <defaults>
</compile_context>

<pallas_src>
import functools

import jax
import jax.numpy as jnp
from jax.experimental import pallas as pl
from jax.experimental.pallas import tpu as pltpu

INPUT_SIZE = 247
HIDDEN_SIZE = 128
OUTPUT_SIZE = 3
DEFAULT_BLOCK_B = 4096   # batch rows per grid step (multiple of 128)

_LANE = 128
_SUBLANE = 8


def _round_up(a, m):
    return (a + m - 1) // m * m


def _mlp_kernel(x_ref, w1_ref, b1_ref, w2_ref, b2_ref, o_ref):
    # fc1: (tb, 247) @ (247, 128) + (1, 128).  K=247 is handled by Mosaic's
    # in-VMEM lane padding/masking; f32-accurate multi-pass MXU matmul.
    h = jnp.dot(
        x_ref[...], w1_ref[...],
        preferred_element_type=jnp.float32,
        precision=jax.lax.Precision.HIGHEST,
    )
    h = jnp.maximum(h + b1_ref[...], 0.0)            # bias + ReLU on the VPU
    # fc2: (tb, 128) @ (128, 3) + (1, 3).  Tiny fraction of the flops; HIGHEST
    # keeps the 1e-5 check honest.
    y = jnp.dot(
        h, w2_ref[...],
        preferred_element_type=jnp.float32,
        precision=jax.lax.Precision.HIGHEST,
    )
    # Lane-dense store: (tb, 3) -> (3, tb) rides the otherwise-idle XLU slot and
    # replaces masked partial stores with full-lane stores.
    o_ref[...] = (y + b2_ref[...]).T.astype(o_ref.dtype)


def _pick_tile(batch, block_b):
    """Batch rows per grid step.

    * batch <= 128: a single full-array block (all block dims equal the array
      dims, so the (8,128) rule is satisfied for any batch).
    * batch  > 128: a multiple of 128 (keeps the transposed (3, tb) output block
      lane-aligned) chosen so the grid has at least 2 steps, letting
      dimension_semantics=("parallel",) shard work over v7x's two TensorCores.
    """
    if batch <= _LANE:
        return batch
    block_b = _round_up(max(block_b, _LANE), _LANE)
    return min(block_b, _round_up(pl.cdiv(batch, 2), _LANE))


def _vmem_limit_bytes(tb):
    # Double-buffered pipeline buffers + generous headroom for compiler temps
    # (h tile, multi-pass f32 matmul scratch).  Clamp to [32, 48] MiB: above
    # v5e's 16 MiB scoped default, below v7x's 64 MiB physical VMEM.
    x_buf = 2 * tb * _round_up(INPUT_SIZE, _LANE) * 4
    o_buf = 2 * _round_up(OUTPUT_SIZE, _SUBLANE) * _round_up(tb, _LANE) * 4
    w_buf = 2 * 4 * (
        _round_up(INPUT_SIZE, _SUBLANE) * HIDDEN_SIZE + _SUBLANE * HIDDEN_SIZE
        + HIDDEN_SIZE * _LANE + _SUBLANE * _LANE
    )
    temps = 3 * tb * HIDDEN_SIZE * 4 + (4 << 20)
    need = x_buf + o_buf + w_buf + temps
    return int(min(48 << 20, max(32 << 20, need)))


@functools.partial(jax.jit, static_argnames=("block_b",))
def laser_regression_forward(x, w1, b1, w2, b2, *, block_b=DEFAULT_BLOCK_B):
    """x: (B, 247); w1: (247, 128); b1: (1, 128); w2: (128, 3); b2: (1, 3)."""
    B, K = x.shape
    assert K == INPUT_SIZE and w1.shape == (INPUT_SIZE, HIDDEN_SIZE)
    assert w2.shape == (HIDDEN_SIZE, OUTPUT_SIZE)

    tb = _pick_tile(B, block_b)
    grid = (pl.cdiv(B, tb),)      # ragged final block handled by Pallas

    flops = 2 * B * (INPUT_SIZE * HIDDEN_SIZE + HIDDEN_SIZE * OUTPUT_SIZE)
    bytes_accessed = 4 * (
        B * (INPUT_SIZE + OUTPUT_SIZE)
        + INPUT_SIZE * HIDDEN_SIZE + HIDDEN_SIZE
        + HIDDEN_SIZE * OUTPUT_SIZE + OUTPUT_SIZE
    )

    out_t = pl.pallas_call(
        _mlp_kernel,
        out_shape=jax.ShapeDtypeStruct((OUTPUT_SIZE, B), jnp.float32),
        grid_spec=pltpu.PrefetchScalarGridSpec(
            num_scalar_prefetch=0,
            grid=grid,
            in_specs=[
                # x: tiled along batch, unpadded K (full-dim last axis),
                # auto double-buffered against compute (the kernel is HBM-bound
                # on this stream).
                pl.BlockSpec((tb, INPUT_SIZE), lambda i: (i, 0)),
                # Weights / biases: whole-array blocks, resident across steps.
                # (pipeline_mode=pl.Buffered(1) would save ~260 KiB; left at the
                #  default double-buffering for lowering robustness.)
                pl.BlockSpec((INPUT_SIZE, HIDDEN_SIZE), lambda i: (0, 0)),
                pl.BlockSpec((1, HIDDEN_SIZE), lambda i: (0, 0)),
                pl.BlockSpec((HIDDEN_SIZE, OUTPUT_SIZE), lambda i: (0, 0)),
                pl.BlockSpec((1, OUTPUT_SIZE), lambda i: (0, 0)),
            ],
            # Lane-dense (transposed) output block: unmasked full-lane stores,
            # contiguous HBM writeback.
            out_specs=pl.BlockSpec((OUTPUT_SIZE, tb), lambda i: (0, i)),
        ),
        compiler_params=pltpu.CompilerParams(
            # Batch steps are independent -> shard across v7x's two TensorCores.
            dimension_semantics=("parallel",),
            vmem_limit_bytes=_vmem_limit_bytes(tb),
        ),
        cost_estimate=pl.CostEstimate(
            flops=flops, transcendentals=0, bytes_accessed=bytes_accessed
        ),
    )(x, w1, b1, w2, b2)

    # Un-transpose in the wrapper: pure layout plumbing on 12 B/row of data.
    return out_t.T


def init_params(key):
    """Deterministic init mirroring nn.Linear's U(-1/sqrt(fan_in), 1/sqrt(fan_in))."""
    k1, k2, k3, k4 = jax.random.split(key, 4)
    bound1 = 1.0 / jnp.sqrt(jnp.float32(INPUT_SIZE))
    bound2 = 1.0 / jnp.sqrt(jnp.float32(HIDDEN_SIZE))
    # stored already transposed: (in_features, out_features)
    w1 = jax.random.uniform(k1, (INPUT_SIZE, HIDDEN_SIZE), jnp.float32, -bound1, bound1)
    b1 = jax.random.uniform(k2, (1, HIDDEN_SIZE), jnp.float32, -bound1, bound1)
    w2 = jax.random.uniform(k3, (HIDDEN_SIZE, OUTPUT_SIZE), jnp.float32, -bound2, bound2)
    b2 = jax.random.uniform(k4, (1, OUTPUT_SIZE), jnp.float32, -bound2, bound2)
    return w1, b1, w2, b2


def reference_forward(x, w1, b1, w2, b2):
    # Same pinned precision as the kernel (the setting the tolerance targets).
    h = jnp.maximum(
        jnp.dot(x, w1, precision=jax.lax.Precision.HIGHEST) + b1, 0.0)
    return jnp.dot(h, w2, precision=jax.lax.Precision.HIGHEST) + b2


if __name__ == "__main__":
    key = jax.random.PRNGKey(0)
    kx, kp, kx2 = jax.random.split(key, 3)
    w1, b1, w2, b2 = init_params(kp)

    # Small batch: single full-array block (grid = (1,)).
    B = 8
    x = jax.random.normal(kx, (B, INPUT_SIZE), jnp.float32)
    out = jax.block_until_ready(laser_regression_forward(x, w1, b1, w2, b2))
    ref = reference_forward(x, w1, b1, w2, b2)
    assert out.shape == (B, OUTPUT_SIZE)
    assert jnp.allclose(out, ref, atol=1e-5, rtol=1e-5)

    # Multi-tile + ragged final block path (tb = 128, grid = (2,), last tile 72 rows).
    B2 = 200
    x2 = jax.random.normal(kx2, (B2, INPUT_SIZE), jnp.float32)
    out2 = jax.block_until_ready(
        laser_regression_forward(x2, w1, b1, w2, b2, block_b=256)
    )
    ref2 = reference_forward(x2, w1, b1, w2, b2)
    assert out2.shape == (B2, OUTPUT_SIZE)
    assert jnp.allclose(out2, ref2, atol=1e-5, rtol=1e-5)

    print("KERNEL_OK")
</pallas_src>

<mosaic_0001>
module attributes {stable_mosaic.version = 11 : i64} {
  func.func @_mlp_kernel(%arg0: i32, %arg1: memref<8x247xf32, #tpu.memory_space<vmem>>, %arg2: memref<247x128xf32, #tpu.memory_space<vmem>>, %arg3: memref<1x128xf32, #tpu.memory_space<vmem>>, %arg4: memref<128x3xf32, #tpu.memory_space<vmem>>, %arg5: memref<1x3xf32, #tpu.memory_space<vmem>>, %arg6: memref<3x8xf32, #tpu.memory_space<vmem>>) attributes {dimension_semantics = [#tpu.dimension_semantics<parallel>], iteration_bounds = array<i64: 1>, scalar_prefetch = 0 : i64, scratch_operands = 0 : i64, tpu.core_type = #tpu.core_type<tc>, window_params = [{transform_indices = @transform_0, window_bounds = array<i64: 8, 247>}, {pipeline_mode = #tpu.pipeline_mode<synchronous>, transform_indices = @transform_1, window_bounds = array<i64: 247, 128>}, {pipeline_mode = #tpu.pipeline_mode<synchronous>, transform_indices = @transform_2, window_bounds = array<i64: 1, 128>}, {pipeline_mode = #tpu.pipeline_mode<synchronous>, transform_indices = @transform_3, window_bounds = array<i64: 128, 3>}, {pipeline_mode = #tpu.pipeline_mode<synchronous>, transform_indices = @transform_4, window_bounds = array<i64: 1, 3>}, {transform_indices = @transform_5, window_bounds = array<i64: 3, 8>}]} {
    %c0 = arith.constant 0 : index
    %c0_0 = arith.constant 0 : index
    %0 = vector.load %arg1[%c0, %c0_0] : memref<8x247xf32, #tpu.memory_space<vmem>>, vector<8x247xf32>
    %c0_1 = arith.constant 0 : index
    %c0_2 = arith.constant 0 : index
    %1 = vector.load %arg2[%c0_1, %c0_2] : memref<247x128xf32, #tpu.memory_space<vmem>>, vector<247x128xf32>
    %cst = arith.constant dense<0.000000e+00> : vector<8x128xf32>
    %2 = tpu.matmul %0, %1, %cst {dimension_numbers = #tpu.dot_dimension_numbers<[1], [0], [0], [1], [0, 0, 1, 1], [], []>, precision = #tpu.contract_precision<fp32>} : vector<8x247xf32>, vector<247x128xf32>, vector<8x128xf32> -> vector<8x128xf32>
    %c0_3 = arith.constant 0 : index
    %c0_4 = arith.constant 0 : index
    %3 = vector.load %arg3[%c0_3, %c0_4] : memref<1x128xf32, #tpu.memory_space<vmem>>, vector<1x128xf32>
    %4 = vector.broadcast %3 : vector<1x128xf32> to vector<8x128xf32>
    %5 = arith.addf %2, %4 : vector<8x128xf32>
    %cst_5 = arith.constant 0.000000e+00 : f32
    %6 = vector.broadcast %cst_5 : f32 to vector<8x128xf32>
    %7 = arith.maximumf %5, %6 : vector<8x128xf32>
    %c0_6 = arith.constant 0 : index
    %c0_7 = arith.constant 0 : index
    %8 = vector.load %arg4[%c0_6, %c0_7] : memref<128x3xf32, #tpu.memory_space<vmem>>, vector<128x3xf32>
    %cst_8 = arith.constant dense<0.000000e+00> : vector<8x3xf32>
    %9 = tpu.matmul %7, %8, %cst_8 {dimension_numbers = #tpu.dot_dimension_numbers<[1], [0], [0], [1], [0, 0, 1, 1], [], []>, precision = #tpu.contract_precision<fp32>} : vector<8x128xf32>, vector<128x3xf32>, vector<8x3xf32> -> vector<8x3xf32>
    %c0_9 = arith.constant 0 : index
    %c0_10 = arith.constant 0 : index
    %10 = vector.load %arg5[%c0_9, %c0_10] : memref<1x3xf32, #tpu.memory_space<vmem>>, vector<1x3xf32>
    %11 = vector.broadcast %10 : vector<1x3xf32> to vector<8x3xf32>
    %12 = arith.addf %9, %11 : vector<8x3xf32>
    %13 = tpu.transpose %12, [1, 0] : vector<8x3xf32> -> vector<3x8xf32>
    %c0_11 = arith.constant 0 : index
    %c0_12 = arith.constant 0 : index
    %14 = vector.load %arg6[%c0_11, %c0_12] : memref<3x8xf32, #tpu.memory_space<vmem>>, vector<3x8xf32>
    tpu.vector_store %arg6[%c0_11, %c0_12], %13 {strides = array<i32>} : memref<3x8xf32, #tpu.memory_space<vmem>>, vector<3x8xf32>,
    return
  }
  func.func @transform_0(%arg0: i32) -> (i32, i32) {
    %c0_i32 = arith.constant 0 : i32
    %c0_i32_0 = arith.constant 0 : i32
    return %arg0, %c0_i32 : i32, i32
  }
  func.func @transform_1(%arg0: i32) -> (i32, i32) {
    %c0_i32 = arith.constant 0 : i32
    %c0_i32_0 = arith.constant 0 : i32
    %c0_i32_1 = arith.constant 0 : i32
    return %c0_i32, %c0_i32_0 : i32, i32
  }
  func.func @transform_2(%arg0: i32) -> (i32, i32) {
    %c0_i32 = arith.constant 0 : i32
    %c0_i32_0 = arith.constant 0 : i32
    %c0_i32_1 = arith.constant 0 : i32
    return %c0_i32, %c0_i32_0 : i32, i32
  }
  func.func @transform_3(%arg0: i32) -> (i32, i32) {
    %c0_i32 = arith.constant 0 : i32
    %c0_i32_0 = arith.constant 0 : i32
    %c0_i32_1 = arith.constant 0 : i32
    return %c0_i32, %c0_i32_0 : i32, i32
  }
  func.func @transform_4(%arg0: i32) -> (i32, i32) {
    %c0_i32 = arith.constant 0 : i32
    %c0_i32_0 = arith.constant 0 : i32
    %c0_i32_1 = arith.constant 0 : i32
    return %c0_i32, %c0_i32_0 : i32, i32
  }
  func.func @transform_5(%arg0: i32) -> (i32, i32) {
    %c0_i32 = arith.constant 0 : i32
    %c0_i32_0 = arith.constant 0 : i32
    return %c0_i32, %arg0 : i32, i32
  }
}

</mosaic_0001>

<llo_original>
// kernel: laser_regression_forward.1
$region0: #{laser_regression_forward.1}
  #allocation0 [shape = 'u32[]', space=smem, size = 0x4, offset = 0x4, fixed_abs, tag = 'smem constant byte address 0x4 - core index']
  #allocation1 [shape = 'u32[144,128]{1,0:T(1,128)}', space=vmem, size = 0x12000, scoped, tag = 'internal scratch']
  %s0 = inlined_call_operand.vmem [shape: f32[8,247], index: 0, kind: input, shape index: {}]
  %s1 = inlined_call_operand.hbm [shape: f32[247,128], index: 1, kind: input, shape index: {}]
  %s2 = inlined_call_operand.vmem [shape: f32[1,128], index: 2, kind: input, shape index: {}]
  %s3 = inlined_call_operand.vmem [shape: f32[128,3], index: 3, kind: input, shape index: {}]
  %s4 = inlined_call_operand.vmem [shape: f32[1,3], index: 4, kind: input, shape index: {}]
  %s5 = inlined_call_operand.hbm [shape: f32[3,8], index: 5, kind: output, shape index: {}]
  %s6 = sld [smem:[#allocation0]]
  $region34: #{laser_regression_forward.1} parent=0
    _
  %s8 = ssub.s32 1, %s6
  %s9 = scalar_select 0, %s8, %s6
  $region1: #{laser_regression_forward.1} parent=0
    #allocation2 [shape = 'u8[126976]{0}', space=vmem, size = 0x1f000, scoped, tag = 'input window, operand 1, single buffered']
    #allocation3 [shape = 's32[1]{0}', space=sflag, size = 0x4, scoped, tag = 'scoped memory for laser_regression_forward.1']
    #allocation4 [shape = 's32[1]{0}', space=sflag, size = 0x4, scoped, tag = 'scoped memory for laser_regression_forward.1']
    #allocation5 [shape = 'u8[2048]{0}', space=vmem, size = 0x800, scoped, tag = 'output window, operand 0, single buffered']
    %10 = vsyncpa [#allocation3], 0
    %11 = vsyncpa [#allocation4], 0
    // Predicated region
    $region2: #{laser_regression_forward.1} parent=1 // pred_check
      _
    $region3: #{laser_regression_forward.1} parent=1 // pred_check_branch
      %13 = sbr.rel (0) target = $region5
    $region4: #{laser_regression_forward.1} parent=1 // pred_region
      _
    $region5: #{laser_regression_forward.1} parent=1 // pred_fallthru
      _
    // Predicated region
    $region6: #{laser_regression_forward.1} parent=1 // pred_check
      _
    $region7: #{laser_regression_forward.1} parent=1 // pred_check_branch
      %15 = sbr.rel (0) target = $region9
    $region8: #{laser_regression_forward.1} parent=1 // pred_region
      %s17 = ssub.s32 3968, 3968
      %18 = vsyncadd [#allocation3], %s17
      %s19 = sshll.u32 [#allocation2], 4
      %s20 = int_to_ptr.vmem [resolvable:$true] %s19
      %25 = dma.hbm_to_vmem [thread:$0]  %s1, 3968, %s20, [#allocation3], 128, 128, 8
    $region9: #{laser_regression_forward.1} parent=1 // pred_fallthru
      _
    // Predicated region
    $region10: #{laser_regression_forward.1} parent=1 // pred_check
      _
    $region11: #{laser_regression_forward.1} parent=1 // pred_check_branch
      %27 = sbr.rel (0) target = $region13
    $region12: #{laser_regression_forward.1} parent=1 // pred_region
      _
    $region13: #{laser_regression_forward.1} parent=1 // pred_fallthru
      _
    // Predicated region
    $region14: #{laser_regression_forward.1} parent=1 // pred_check
      _
    $region15: #{laser_regression_forward.1} parent=1 // pred_check_branch
      %29 = sbr.rel (0) target = $region17
    $region16: #{laser_regression_forward.1} parent=1 // pred_region
      _
    $region17: #{laser_regression_forward.1} parent=1 // pred_fallthru
      _
    // Predicated region
    $region18: #{laser_regression_forward.1} parent=1 // pred_check
      _
    $region19: #{laser_regression_forward.1} parent=1 // pred_check_branch
      %31 = sbr.rel (0) target = $region21
    $region20: #{laser_regression_forward.1} parent=1 // pred_region
      _
    $region21: #{laser_regression_forward.1} parent=1 // pred_fallthru
      _
    // Predicated region
    $region22: #{laser_regression_forward.1} parent=1 // pred_check
      _
    $region23: #{laser_regression_forward.1} parent=1 // pred_check_branch
      %33 = sbr.rel (0) target = $region25
    $region24: #{laser_regression_forward.1} parent=1 // pred_region
      %34 = dma.done [#allocation3], 3968
    $region25: #{laser_regression_forward.1} parent=1 // pred_fallthru
      _
    %v35 = vld [vmem:[%s0] sm:$0xff]
    %v36 = vld [vmem:[%s0 + $0x8] sm:$0xff]
    %v37 = vld [vmem:[#allocation2] sm:$0xff]
    %v38 = vld [vmem:[#allocation2 + $0x8] sm:$0xff]
    %v39 = vld [vmem:[#allocation2 + $0x10] sm:$0xff]
    %v40 = vld [vmem:[#allocation2 + $0x18] sm:$0xff]
    %v41 = vld [vmem:[#allocation2 + $0x20] sm:$0xff]
    %v42 = vld [vmem:[#allocation2 + $0x28] sm:$0xff]
    %v43 = vld [vmem:[#allocation2 + $0x30] sm:$0xff]
    %v44 = vld [vmem:[#allocation2 + $0x38] sm:$0xff]
    %v45 = vld [vmem:[#allocation2 + $0x40] sm:$0xff]
    %v46 = vld [vmem:[#allocation2 + $0x48] sm:$0xff]
    %v47 = vld [vmem:[#allocation2 + $0x50] sm:$0xff]
    %v48 = vld [vmem:[#allocation2 + $0x58] sm:$0xff]
    %v49 = vld [vmem:[#allocation2 + $0x60] sm:$0xff]
    %v50 = vld [vmem:[#allocation2 + $0x68] sm:$0xff]
    %v51 = vld [vmem:[#allocation2 + $0x70] sm:$0xff]
    %v52 = vld [vmem:[#allocation2 + $0x78] sm:$0xff]
    %v53 = vld [vmem:[#allocation2 + $0x80] sm:$0xff]
    %v54 = vld [vmem:[#allocation2 + $0x88] sm:$0xff]
    %v55 = vld [vmem:[#allocation2 + $0x90] sm:$0xff]
    %v56 = vld [vmem:[#allocation2 + $0x98] sm:$0xff]
    %v57 = vld [vmem:[#allocation2 + $0xa0] sm:$0xff]
    %v58 = vld [vmem:[#allocation2 + $0xa8] sm:$0xff]
    %v59 = vld [vmem:[#allocation2 + $0xb0] sm:$0xff]
    %v60 = vld [vmem:[#allocation2 + $0xb8] sm:$0xff]
    %v61 = vld [vmem:[#allocation2 + $0xc0] sm:$0xff]
    %v62 = vld [vmem:[#allocation2 + $0xc8] sm:$0xff]
    %v63 = vld [vmem:[#allocation2 + $0xd0] sm:$0xff]
    %v64 = vld [vmem:[#allocation2 + $0xd8] sm:$0xff]
    %v65 = vld [vmem:[#allocation2 + $0xe0] sm:$0xff]
    %v66 = vld [vmem:[#allocation2 + $0xe8] sm:$0xff]
    %v67 = vld [vmem:[#allocation2 + $0xf0] sm:$0x7f]
    %v68 = vld [vmem:[%s2] sm:$0x1]
    %v70 = vlaneseq
    %v71 = vshrl.u32 %v70, 7
    %v72 = vsub.s32 0, %v71
    %v73 = vrot.slane %v68, %v72
    %vm75 = vcmask 973824
    %v77 = vsel %vm75, %v36, 0
    %vm79 = vcmask 1046528
    %v81 = vsel %vm79, %v67, 0
    %83 = vmatprep.subr.mxu0 0.0
    %v84 = vand.u32 %v37, 4294901760
    %85 = vmatpush1.msra.mxu0 %v84
    %86 = vmatprep.subr.mxu0 0.0
    %v87 = vand.u32 %v38, 4294901760
    %88 = vmatpush1.msra.mxu0 %v87
    %89 = vmatprep.subr.mxu0 0.0
    %v90 = vand.u32 %v39, 4294901760
    %91 = vmatpush1.msra.mxu0 %v90
    %92 = vmatprep.subr.mxu0 0.0
    %v93 = vand.u32 %v40, 4294901760
    %94 = vmatpush1.msra.mxu0 %v93
    %95 = vmatprep.subr.mxu0 0.0
    %v96 = vand.u32 %v41, 4294901760
    %97 = vmatpush1.msra.mxu0 %v96
    %98 = vmatprep.subr.mxu0 0.0
    %v99 = vand.u32 %v42, 4294901760
    %100 = vmatpush1.msra.mxu0 %v99
    %101 = vmatprep.subr.mxu0 0.0
    %v102 = vand.u32 %v43, 4294901760
    %103 = vmatpush1.msra.mxu0 %v102
    %104 = vmatprep.subr.mxu0 0.0
    %v105 = vand.u32 %v44, 4294901760
    %106 = vmatpush1.msra.mxu0 %v105
    %107 = vmatprep.subr.mxu0 0.0
    %v108 = vand.u32 %v45, 4294901760
    %109 = vmatpush1.msra.mxu0 %v108
    %110 = vmatprep.subr.mxu0 0.0
    %v111 = vand.u32 %v46, 4294901760
    %112 = vmatpush1.msra.mxu0 %v111
    %113 = vmatprep.subr.mxu0 0.0
    %v114 = vand.u32 %v47, 4294901760
    %115 = vmatpush1.msra.mxu0 %v114
    %116 = vmatprep.subr.mxu0 0.0
    %v117 = vand.u32 %v48, 4294901760
    %118 = vmatpush1.msra.mxu0 %v117
    %119 = vmatprep.subr.mxu0 0.0
    %v120 = vand.u32 %v49, 4294901760
    %121 = vmatpush1.msra.mxu0 %v120
    %122 = vmatprep.subr.mxu0 0.0
    %v123 = vand.u32 %v50, 4294901760
    %124 = vmatpush1.msra.mxu0 %v123
    %125 = vmatprep.subr.mxu0 0.0
    %v126 = vand.u32 %v51, 4294901760
    %127 = vmatpush1.msra.mxu0 %v126
    %128 = vmatprep.subr.mxu0 0.0
    %v129 = vand.u32 %v52, 4294901760
    %130 = vmatpush1.msra.mxu0 %v129
    %131 = vmatprep.subr.mxu0 0.0
    %v132 = vand.u32 %v53, 4294901760
    %133 = vmatpush1.msra.mxu0 %v132
    %134 = vmatprep.subr.mxu0 0.0
    %v135 = vand.u32 %v54, 4294901760
    %136 = vmatpush1.msra.mxu0 %v135
    %137 = vmatprep.subr.mxu0 0.0
    %v138 = vand.u32 %v55, 4294901760
    %139 = vmatpush1.msra.mxu0 %v138
    %140 = vmatprep.subr.mxu0 0.0
    %v141 = vand.u32 %v56, 4294901760
    %142 = vmatpush1.msra.mxu0 %v141
    %143 = vmatprep.subr.mxu0 0.0
    %v144 = vand.u32 %v57, 4294901760
    %145 = vmatpush1.msra.mxu0 %v144
    %146 = vmatprep.subr.mxu0 0.0
    %v147 = vand.u32 %v58, 4294901760
    %148 = vmatpush1.msra.mxu0 %v147
    %149 = vmatprep.subr.mxu0 0.0
    %v150 = vand.u32 %v59, 4294901760
    %151 = vmatpush1.msra.mxu0 %v150
    %152 = vmatprep.subr.mxu0 0.0
    %v153 = vand.u32 %v60, 4294901760
    %154 = vmatpush1.msra.mxu0 %v153
    %155 = vmatprep.subr.mxu0 0.0
    %v156 = vand.u32 %v61, 4294901760
    %157 = vmatpush1.msra.mxu0 %v156
    %158 = vmatprep.subr.mxu0 0.0
    %v159 = vand.u32 %v62, 4294901760
    %160 = vmatpush1.msra.mxu0 %v159
    %161 = vmatprep.subr.mxu0 0.0
    %v162 = vand.u32 %v63, 4294901760
    %163 = vmatpush1.msra.mxu0 %v162
    %164 = vmatprep.subr.mxu0 0.0
    %v165 = vand.u32 %v64, 4294901760
    %166 = vmatpush1.msra.mxu0 %v165
    %167 = vmatprep.subr.mxu0 0.0
    %v168 = vand.u32 %v65, 4294901760
    %169 = vmatpush1.msra.mxu0 %v168
    %170 = vmatprep.subr.mxu0 0.0
    %v171 = vand.u32 %v66, 4294901760
    %172 = vmatpush1.msra.mxu0 %v171
    %173 = vmatprep.subr.mxu0 0.0
    %v174 = vand.u32 %v81, 4294901760
    %175 = vmatpush1.msra.mxu0 %v174
    %176 = vmatprep.subr.mxu0 0.0
    %177 = vmatpush1.msra.mxu0 0.0
    %v178 = vand.u32 %v77, 4294901760
    %v179 = vsub.f32 %v77, %v178
    %v180 = vand.u32 %v179, 4294901760
    %v181 = vsub.f32 %v179, %v180
    %v182 = vand.u32 %v181, 4294901760
    %183 = vmatprep.mubr.f32.mxu0 %v182
    %v184 = vand.u32 %v35, 4294901760
    %v185 = vsub.f32 %v35, %v184
    %v186 = vand.u32 %v185, 4294901760
    %v187 = vsub.f32 %v185, %v186
    %v188 = vand.u32 %v187, 4294901760
    %189 = vmatmul.mubr.f32.gmra.mrb[0].mxu0 %v188
    %v190 = vpop.f32.mrb[0].mxu0
    %v191 = vadd.f32 %v73, %v190
    %v192 = vpop.f32.mrb[0].mxu0
    %193 = vdwg.mxu0
    %194 = vmatprep.subr.mxu0 0.0
    %v195 = vand.u32 %v37, 4294901760
    %v196 = vsub.f32 %v37, %v195
    %v197 = vand.u32 %v196, 4294901760
    %v198 = vsub.f32 %v196, %v197
    %v199 = vand.u32 %v198, 4294901760
    %200 = vmatpush1.msra.mxu0 %v199
    %201 = vmatprep.subr.mxu0 0.0
    %v202 = vand.u32 %v38, 4294901760
    %v203 = vsub.f32 %v38, %v202
    %v204 = vand.u32 %v203, 4294901760
    %v205 = vsub.f32 %v203, %v204
    %v206 = vand.u32 %v205, 4294901760
    %207 = vmatpush1.msra.mxu0 %v206
    %208 = vmatprep.subr.mxu0 0.0
    %v209 = vand.u32 %v39, 4294901760
    %v210 = vsub.f32 %v39, %v209
    %v211 = vand.u32 %v210, 4294901760
    %v212 = vsub.f32 %v210, %v211
    %v213 = vand.u32 %v212, 4294901760
    %214 = vmatpush1.msra.mxu0 %v213
    %215 = vmatprep.subr.mxu0 0.0
    %v216 = vand.u32 %v40, 4294901760
    %v217 = vsub.f32 %v40, %v216
    %v218 = vand.u32 %v217, 4294901760
    %v219 = vsub.f32 %v217, %v218
    %v220 = vand.u32 %v219, 4294901760
    %221 = vmatpush1.msra.mxu0 %v220
    %222 = vmatprep.subr.mxu0 0.0
    %v223 = vand.u32 %v41, 4294901760
    %v224 = vsub.f32 %v41, %v223
    %v225 = vand.u32 %v224, 4294901760
    %v226 = vsub.f32 %v224, %v225
    %v227 = vand.u32 %v226, 4294901760
    %228 = vmatpush1.msra.mxu0 %v227
    %229 = vmatprep.subr.mxu0 0.0
    %v230 = vand.u32 %v42, 4294901760
    %v231 = vsub.f32 %v42, %v230
    %v232 = vand.u32 %v231, 4294901760
    %v233 = vsub.f32 %v231, %v232
    %v234 = vand.u32 %v233, 4294901760
    %235 = vmatpush1.msra.mxu0 %v234
    %236 = vmatprep.subr.mxu0 0.0
    %v237 = vand.u32 %v43, 4294901760
    %v238 = vsub.f32 %v43, %v237
    %v239 = vand.u32 %v238, 4294901760
    %v240 = vsub.f32 %v238, %v239
    %v241 = vand.u32 %v240, 4294901760
    %242 = vmatpush1.msra.mxu0 %v241
    %243 = vmatprep.subr.mxu0 0.0
    %v244 = vand.u32 %v44, 4294901760
    %v245 = vsub.f32 %v44, %v244
    %v246 = vand.u32 %v245, 4294901760
    %v247 = vsub.f32 %v245, %v246
    %v248 = vand.u32 %v247, 4294901760
    %249 = vmatpush1.msra.mxu0 %v248
    %250 = vmatprep.subr.mxu0 0.0
    %v251 = vand.u32 %v45, 4294901760
    %v252 = vsub.f32 %v45, %v251
    %v253 = vand.u32 %v252, 4294901760
    %v254 = vsub.f32 %v252, %v253
    %v255 = vand.u32 %v254, 4294901760
    %256 = vmatpush1.msra.mxu0 %v255
    %257 = vmatprep.subr.mxu0 0.0
    %v258 = vand.u32 %v46, 4294901760
    %v259 = vsub.f32 %v46, %v258
    %v260 = vand.u32 %v259, 4294901760
    %v261 = vsub.f32 %v259, %v260
    %v262 = vand.u32 %v261, 4294901760
    %263 = vmatpush1.msra.mxu0 %v262
    %264 = vmatprep.subr.mxu0 0.0
    %v265 = vand.u32 %v47, 4294901760
    %v266 = vsub.f32 %v47, %v265
    %v267 = vand.u32 %v266, 4294901760
    %v268 = vsub.f32 %v266, %v267
    %v269 = vand.u32 %v268, 4294901760
    %270 = vmatpush1.msra.mxu0 %v269
    %271 = vmatprep.subr.mxu0 0.0
    %v272 = vand.u32 %v48, 4294901760
    %v273 = vsub.f32 %v48, %v272
    %v274 = vand.u32 %v273, 4294901760
    %v275 = vsub.f32 %v273, %v274
    %v276 = vand.u32 %v275, 4294901760
    %277 = vmatpush1.msra.mxu0 %v276
    %278 = vmatprep.subr.mxu0 0.0
    %v279 = vand.u32 %v49, 4294901760
    %v280 = vsub.f32 %v49, %v279
    %v281 = vand.u32 %v280, 4294901760
    %v282 = vsub.f32 %v280, %v281
    %v283 = vand.u32 %v282, 4294901760
    %284 = vmatpush1.msra.mxu0 %v283
    %285 = vmatprep.subr.mxu0 0.0
    %v286 = vand.u32 %v50, 4294901760
    %v287 = vsub.f32 %v50, %v286
    %v288 = vand.u32 %v287, 4294901760
    %v289 = vsub.f32 %v287, %v288
    %v290 = vand.u32 %v289, 4294901760
    %291 = vmatpush1.msra.mxu0 %v290
    %292 = vmatprep.subr.mxu0 0.0
    %v293 = vand.u32 %v51, 4294901760
    %v294 = vsub.f32 %v51, %v293
    %v295 = vand.u32 %v294, 4294901760
    %v296 = vsub.f32 %v294, %v295
    %v297 = vand.u32 %v296, 4294901760
    %298 = vmatpush1.msra.mxu0 %v297
    %299 = vmatprep.subr.mxu0 0.0
    %v300 = vand.u32 %v52, 4294901760
    %v301 = vsub.f32 %v52, %v300
    %v302 = vand.u32 %v301, 4294901760
    %v303 = vsub.f32 %v301, %v302
    %v304 = vand.u32 %v303, 4294901760
    %305 = vmatpush1.msra.mxu0 %v304
    %306 = vmatprep.subr.mxu0 0.0
    %v307 = vand.u32 %v53, 4294901760
    %v308 = vsub.f32 %v53, %v307
    %v309 = vand.u32 %v308, 4294901760
    %v310 = vsub.f32 %v308, %v309
    %v311 = vand.u32 %v310, 4294901760
    %312 = vmatpush1.msra.mxu0 %v311
    %313 = vmatprep.subr.mxu0 0.0
    %v314 = vand.u32 %v54, 4294901760
    %v315 = vsub.f32 %v54, %v314
    %v316 = vand.u32 %v315, 4294901760
    %v317 = vsub.f32 %v315, %v316
    %v318 = vand.u32 %v317, 4294901760
    %319 = vmatpush1.msra.mxu0 %v318
    %320 = vmatprep.subr.mxu0 0.0
    %v321 = vand.u32 %v55, 4294901760
    %v322 = vsub.f32 %v55, %v321
    %v323 = vand.u32 %v322, 4294901760
    %v324 = vsub.f32 %v322, %v323
    %v325 = vand.u32 %v324, 4294901760
    %326 = vmatpush1.msra.mxu0 %v325
    %327 = vmatprep.subr.mxu0 0.0
    %v328 = vand.u32 %v56, 4294901760
    %v329 = vsub.f32 %v56, %v328
    %v330 = vand.u32 %v329, 4294901760
    %v331 = vsub.f32 %v329, %v330
    %v332 = vand.u32 %v331, 4294901760
    %333 = vmatpush1.msra.mxu0 %v332
    %334 = vmatprep.subr.mxu0 0.0
    %v335 = vand.u32 %v57, 4294901760
    %v336 = vsub.f32 %v57, %v335
    %v337 = vand.u32 %v336, 4294901760
    %v338 = vsub.f32 %v336, %v337
    %v339 = vand.u32 %v338, 4294901760
    %340 = vmatpush1.msra.mxu0 %v339
    %341 = vmatprep.subr.mxu0 0.0
    %v342 = vand.u32 %v58, 4294901760
    %v343 = vsub.f32 %v58, %v342
    %v344 = vand.u32 %v343, 4294901760
    %v345 = vsub.f32 %v343, %v344
    %v346 = vand.u32 %v345, 4294901760
    %347 = vmatpush1.msra.mxu0 %v346
    %348 = vmatprep.subr.mxu0 0.0
    %v349 = vand.u32 %v59, 4294901760
    %v350 = vsub.f32 %v59, %v349
    %v351 = vand.u32 %v350, 4294901760
    %v352 = vsub.f32 %v350, %v351
    %v353 = vand.u32 %v352, 4294901760
    %354 = vmatpush1.msra.mxu0 %v353
    %355 = vmatprep.subr.mxu0 0.0
    %v356 = vand.u32 %v60, 4294901760
    %v357 = vsub.f32 %v60, %v356
    %v358 = vand.u32 %v357, 4294901760
    %v359 = vsub.f32 %v357, %v358
    %v360 = vand.u32 %v359, 4294901760
    %361 = vmatpush1.msra.mxu0 %v360
    %362 = vmatprep.subr.mxu0 0.0
    %v363 = vand.u32 %v61, 4294901760
    %v364 = vsub.f32 %v61, %v363
    %v365 = vand.u32 %v364, 4294901760
    %v366 = vsub.f32 %v364, %v365
    %v367 = vand.u32 %v366, 4294901760
    %368 = vmatpush1.msra.mxu0 %v367
    %369 = vmatprep.subr.mxu0 0.0
    %v370 = vand.u32 %v62, 4294901760
    %v371 = vsub.f32 %v62, %v370
    %v372 = vand.u32 %v371, 4294901760
    %v373 = vsub.f32 %v371, %v372
    %v374 = vand.u32 %v373, 4294901760
    %375 = vmatpush1.msra.mxu0 %v374
    %376 = vmatprep.subr.mxu0 0.0
    %v377 = vand.u32 %v63, 4294901760
    %v378 = vsub.f32 %v63, %v377
    %v379 = vand.u32 %v378, 4294901760
    %v380 = vsub.f32 %v378, %v379
    %v381 = vand.u32 %v380, 4294901760
    %382 = vmatpush1.msra.mxu0 %v381
    %383 = vmatprep.subr.mxu0 0.0
    %v384 = vand.u32 %v64, 4294901760
    %v385 = vsub.f32 %v64, %v384
    %v386 = vand.u32 %v385, 4294901760
    %v387 = vsub.f32 %v385, %v386
    %v388 = vand.u32 %v387, 4294901760
    %389 = vmatpush1.msra.mxu0 %v388
    %390 = vmatprep.subr.mxu0 0.0
    %v391 = vand.u32 %v65, 4294901760
    %v392 = vsub.f32 %v65, %v391
    %v393 = vand.u32 %v392, 4294901760
    %v394 = vsub.f32 %v392, %v393
    %v395 = vand.u32 %v394, 4294901760
    %396 = vmatpush1.msra.mxu0 %v395
    %397 = vmatprep.subr.mxu0 0.0
    %v398 = vand.u32 %v66, 4294901760
    %v399 = vsub.f32 %v66, %v398
    %v400 = vand.u32 %v399, 4294901760
    %v401 = vsub.f32 %v399, %v400
    %v402 = vand.u32 %v401, 4294901760
    %403 = vmatpush1.msra.mxu0 %v402
    %404 = vmatprep.subr.mxu0 0.0
    %v405 = vand.u32 %v81, 4294901760
    %v406 = vsub.f32 %v81, %v405
    %v407 = vand.u32 %v406, 4294901760
    %v408 = vsub.f32 %v406, %v407
    %v409 = vand.u32 %v408, 4294901760
    %410 = vmatpush1.msra.mxu0 %v409
    %411 = vmatprep.subr.mxu0 0.0
    %412 = vmatpush1.msra.mxu0 0.0
    %v413 = vand.u32 %v77, 4294901760
    %414 = vmatprep.mubr.f32.mxu0 %v413
    %v415 = vand.u32 %v35, 4294901760
    %416 = vmatmul.mubr.f32.gmra.mrb[0].mxu0 %v415
    %v417 = vpop.f32.mrb[0].mxu0
    %v418 = vadd.f32 %v191, %v417
    %v419 = vpop.f32.mrb[0].mxu0
    %420 = vdwg.mxu0
    %421 = vmatprep.subr.mxu0 0.0
    %v422 = vand.u32 %v37, 4294901760
    %v423 = vsub.f32 %v37, %v422
    %424 = vmatpush1.msra.mxu0 %v423
    %425 = vmatprep.subr.mxu0 0.0
    %v426 = vand.u32 %v38, 4294901760
    %v427 = vsub.f32 %v38, %v426
    %428 = vmatpush1.msra.mxu0 %v427
    %429 = vmatprep.subr.mxu0 0.0
    %v430 = vand.u32 %v39, 4294901760
    %v431 = vsub.f32 %v39, %v430
    %432 = vmatpush1.msra.mxu0 %v431
    %433 = vmatprep.subr.mxu0 0.0
    %v434 = vand.u32 %v40, 4294901760
    %v435 = vsub.f32 %v40, %v434
    %436 = vmatpush1.msra.mxu0 %v435
    %437 = vmatprep.subr.mxu0 0.0
    %v438 = vand.u32 %v41, 4294901760
    %v439 = vsub.f32 %v41, %v438
    %440 = vmatpush1.msra.mxu0 %v439
    %441 = vmatprep.subr.mxu0 0.0
    %v442 = vand.u32 %v42, 4294901760
    %v443 = vsub.f32 %v42, %v442
    %444 = vmatpush1.msra.mxu0 %v443
    %445 = vmatprep.subr.mxu0 0.0
    %v446 = vand.u32 %v43, 4294901760
    %v447 = vsub.f32 %v43, %v446
    %448 = vmatpush1.msra.mxu0 %v447
    %449 = vmatprep.subr.mxu0 0.0
    %v450 = vand.u32 %v44, 4294901760
    %v451 = vsub.f32 %v44, %v450
    %452 = vmatpush1.msra.mxu0 %v451
    %453 = vmatprep.subr.mxu0 0.0
    %v454 = vand.u32 %v45, 4294901760
    %v455 = vsub.f32 %v45, %v454
    %456 = vmatpush1.msra.mxu0 %v455
    %457 = vmatprep.subr.mxu0 0.0
    %v458 = vand.u32 %v46, 4294901760
    %v459 = vsub.f32 %v46, %v458
    %460 = vmatpush1.msra.mxu0 %v459
    %461 = vmatprep.subr.mxu0 0.0
    %v462 = vand.u32 %v47, 4294901760
    %v463 = vsub.f32 %v47, %v462
    %464 = vmatpush1.msra.mxu0 %v463
    %465 = vmatprep.subr.mxu0 0.0
    %v466 = vand.u32 %v48, 4294901760
    %v467 = vsub.f32 %v48, %v466
    %468 = vmatpush1.msra.mxu0 %v467
    %469 = vmatprep.subr.mxu0 0.0
    %v470 = vand.u32 %v49, 4294901760
    %v471 = vsub.f32 %v49, %v470
    %472 = vmatpush1.msra.mxu0 %v471
    %473 = vmatprep.subr.mxu0 0.0
    %v474 = vand.u32 %v50, 4294901760
    %v475 = vsub.f32 %v50, %v474
    %476 = vmatpush1.msra.mxu0 %v475
    %477 = vmatprep.subr.mxu0 0.0
    %v478 = vand.u32 %v51, 4294901760
    %v479 = vsub.f32 %v51, %v478
    %480 = vmatpush1.msra.mxu0 %v479
    %481 = vmatprep.subr.mxu0 0.0
    %v482 = vand.u32 %v52, 4294901760
    %v483 = vsub.f32 %v52, %v482
    %484 = vmatpush1.msra.mxu0 %v483
    %485 = vmatprep.subr.mxu0 0.0
    %v486 = vand.u32 %v53, 4294901760
    %v487 = vsub.f32 %v53, %v486
    %488 = vmatpush1.msra.mxu0 %v487
    %489 = vmatprep.subr.mxu0 0.0
    %v490 = vand.u32 %v54, 4294901760
    %v491 = vsub.f32 %v54, %v490
    %492 = vmatpush1.msra.mxu0 %v491
    %493 = vmatprep.subr.mxu0 0.0
    %v494 = vand.u32 %v55, 4294901760
    %v495 = vsub.f32 %v55, %v494
    %496 = vmatpush1.msra.mxu0 %v495
    %497 = vmatprep.subr.mxu0 0.0
    %v498 = vand.u32 %v56, 4294901760
    %v499 = vsub.f32 %v56, %v498
    %500 = vmatpush1.msra.mxu0 %v499
    %501 = vmatprep.subr.mxu0 0.0
    %v502 = vand.u32 %v57, 4294901760
    %v503 = vsub.f32 %v57, %v502
    %504 = vmatpush1.msra.mxu0 %v503
    %505 = vmatprep.subr.mxu0 0.0
    %v506 = vand.u32 %v58, 4294901760
    %v507 = vsub.f32 %v58, %v506
    %508 = vmatpush1.msra.mxu0 %v507
    %509 = vmatprep.subr.mxu0 0.0
    %v510 = vand.u32 %v59, 4294901760
    %v511 = vsub.f32 %v59, %v510
    %512 = vmatpush1.msra.mxu0 %v511
    %513 = vmatprep.subr.mxu0 0.0
    %v514 = vand.u32 %v60, 4294901760
    %v515 = vsub.f32 %v60, %v514
    %516 = vmatpush1.msra.mxu0 %v515
    %517 = vmatprep.subr.mxu0 0.0
    %v518 = vand.u32 %v61, 4294901760
    %v519 = vsub.f32 %v61, %v518
    %520 = vmatpush1.msra.mxu0 %v519
    %521 = vmatprep.subr.mxu0 0.0
    %v522 = vand.u32 %v62, 4294901760
    %v523 = vsub.f32 %v62, %v522
    %524 = vmatpush1.msra.mxu0 %v523
    %525 = vmatprep.subr.mxu0 0.0
    %v526 = vand.u32 %v63, 4294901760
    %v527 = vsub.f32 %v63, %v526
    %528 = vmatpush1.msra.mxu0 %v527
    %529 = vmatprep.subr.mxu0 0.0
    %v530 = vand.u32 %v64, 4294901760
    %v531 = vsub.f32 %v64, %v530
    %532 = vmatpush1.msra.mxu0 %v531
    %533 = vmatprep.subr.mxu0 0.0
    %v534 = vand.u32 %v65, 4294901760
    %v535 = vsub.f32 %v65, %v534
    %536 = vmatpush1.msra.mxu0 %v535
    %537 = vmatprep.subr.mxu0 0.0
    %v538 = vand.u32 %v66, 4294901760
    %v539 = vsub.f32 %v66, %v538
    %540 = vmatpush1.msra.mxu0 %v539
    %541 = vmatprep.subr.mxu0 0.0
    %v542 = vand.u32 %v81, 4294901760
    %v543 = vsub.f32 %v81, %v542
    %544 = vmatpush1.msra.mxu0 %v543
    %545 = vmatprep.subr.mxu0 0.0
    %546 = vmatpush1.msra.mxu0 0.0
    %v547 = vand.u32 %v77, 4294901760
    %v548 = vsub.f32 %v77, %v547
    %549 = vmatprep.mubr.f32.mxu0 %v548
    %v550 = vand.u32 %v35, 4294901760
    %v551 = vsub.f32 %v35, %v550
    %552 = vmatmul.mubr.f32.gmra.mrb[0].mxu0 %v551
    %v553 = vpop.f32.mrb[0].mxu0
    %v554 = vadd.f32 %v418, %v553
    %v555 = vpop.f32.mrb[0].mxu0
    %556 = vdwg.mxu0
    %557 = vmatprep.subr.mxu0 0.0
    %v558 = vand.u32 %v37, 4294901760
    %559 = vmatpush1.msra.mxu0 %v558
    %560 = vmatprep.subr.mxu0 0.0
    %v561 = vand.u32 %v38, 4294901760
    %562 = vmatpush1.msra.mxu0 %v561
    %563 = vmatprep.subr.mxu0 0.0
    %v564 = vand.u32 %v39, 4294901760
    %565 = vmatpush1.msra.mxu0 %v564
    %566 = vmatprep.subr.mxu0 0.0
    %v567 = vand.u32 %v40, 4294901760
    %568 = vmatpush1.msra.mxu0 %v567
    %569 = vmatprep.subr.mxu0 0.0
    %v570 = vand.u32 %v41, 4294901760
    %571 = vmatpush1.msra.mxu0 %v570
    %572 = vmatprep.subr.mxu0 0.0
    %v573 = vand.u32 %v42, 4294901760
    %574 = vmatpush1.msra.mxu0 %v573
    %575 = vmatprep.subr.mxu0 0.0
    %v576 = vand.u32 %v43, 4294901760
    %577 = vmatpush1.msra.mxu0 %v576
    %578 = vmatprep.subr.mxu0 0.0
    %v579 = vand.u32 %v44, 4294901760
    %580 = vmatpush1.msra.mxu0 %v579
    %581 = vmatprep.subr.mxu0 0.0
    %v582 = vand.u32 %v45, 4294901760
    %583 = vmatpush1.msra.mxu0 %v582
    %584 = vmatprep.subr.mxu0 0.0
    %v585 = vand.u32 %v46, 4294901760
    %586 = vmatpush1.msra.mxu0 %v585
    %587 = vmatprep.subr.mxu0 0.0
    %v588 = vand.u32 %v47, 4294901760
    %589 = vmatpush1.msra.mxu0 %v588
    %590 = vmatprep.subr.mxu0 0.0
    %v591 = vand.u32 %v48, 4294901760
    %592 = vmatpush1.msra.mxu0 %v591
    %593 = vmatprep.subr.mxu0 0.0
    %v594 = vand.u32 %v49, 4294901760
    %595 = vmatpush1.msra.mxu0 %v594
    %596 = vmatprep.subr.mxu0 0.0
    %v597 = vand.u32 %v50, 4294901760
    %598 = vmatpush1.msra.mxu0 %v597
    %599 = vmatprep.subr.mxu0 0.0
    %v600 = vand.u32 %v51, 4294901760
    %601 = vmatpush1.msra.mxu0 %v600
    %602 = vmatprep.subr.mxu0 0.0
    %v603 = vand.u32 %v52, 4294901760
    %604 = vmatpush1.msra.mxu0 %v603
    %605 = vmatprep.subr.mxu0 0.0
    %v606 = vand.u32 %v53, 4294901760
    %607 = vmatpush1.msra.mxu0 %v606
    %608 = vmatprep.subr.mxu0 0.0
    %v609 = vand.u32 %v54, 4294901760
    %610 = vmatpush1.msra.mxu0 %v609
    %611 = vmatprep.subr.mxu0 0.0
    %v612 = vand.u32 %v55, 4294901760
    %613 = vmatpush1.msra.mxu0 %v612
    %614 = vmatprep.subr.mxu0 0.0
    %v615 = vand.u32 %v56, 4294901760
    %616 = vmatpush1.msra.mxu0 %v615
    %617 = vmatprep.subr.mxu0 0.0
    %v618 = vand.u32 %v57, 4294901760
    %619 = vmatpush1.msra.mxu0 %v618
    %620 = vmatprep.subr.mxu0 0.0
    %v621 = vand.u32 %v58, 4294901760
    %622 = vmatpush1.msra.mxu0 %v621
    %623 = vmatprep.subr.mxu0 0.0
    %v624 = vand.u32 %v59, 4294901760
    %625 = vmatpush1.msra.mxu0 %v624
    %626 = vmatprep.subr.mxu0 0.0
    %v627 = vand.u32 %v60, 4294901760
    %628 = vmatpush1.msra.mxu0 %v627
    %629 = vmatprep.subr.mxu0 0.0
    %v630 = vand.u32 %v61, 4294901760
    %631 = vmatpush1.msra.mxu0 %v630
    %632 = vmatprep.subr.mxu0 0.0
    %v633 = vand.u32 %v62, 4294901760
    %634 = vmatpush1.msra.mxu0 %v633
    %635 = vmatprep.subr.mxu0 0.0
    %v636 = vand.u32 %v63, 4294901760
    %637 = vmatpush1.msra.mxu0 %v636
    %638 = vmatprep.subr.mxu0 0.0
    %v639 = vand.u32 %v64, 4294901760
    %640 = vmatpush1.msra.mxu0 %v639
    %641 = vmatprep.subr.mxu0 0.0
    %v642 = vand.u32 %v65, 4294901760
    %643 = vmatpush1.msra.mxu0 %v642
    %644 = vmatprep.subr.mxu0 0.0
    %v645 = vand.u32 %v66, 4294901760
    %646 = vmatpush1.msra.mxu0 %v645
    %647 = vmatprep.subr.mxu0 0.0
    %v648 = vand.u32 %v81, 4294901760
    %649 = vmatpush1.msra.mxu0 %v648
    %650 = vmatprep.subr.mxu0 0.0
    %651 = vmatpush1.msra.mxu0 0.0
    %v652 = vand.u32 %v77, 4294901760
    %v653 = vsub.f32 %v77, %v652
    %v654 = vand.u32 %v653, 4294901760
    %655 = vmatprep.mubr.f32.mxu0 %v654
    %v656 = vand.u32 %v35, 4294901760
    %v657 = vsub.f32 %v35, %v656
    %v658 = vand.u32 %v657, 4294901760
    %659 = vmatmul.mubr.f32.gmra.mrb[0].mxu0 %v658
    %v660 = vpop.f32.mrb[0].mxu0
    %v661 = vadd.f32 %v554, %v660
    %v662 = vpop.f32.mrb[0].mxu0
    %663 = vdwg.mxu0
    %664 = vmatprep.subr.mxu0 0.0
    %v665 = vand.u32 %v37, 4294901760
    %v666 = vsub.f32 %v37, %v665
    %v667 = vand.u32 %v666, 4294901760
    %668 = vmatpush1.msra.mxu0 %v667
    %669 = vmatprep.subr.mxu0 0.0
    %v670 = vand.u32 %v38, 4294901760
    %v671 = vsub.f32 %v38, %v670
    %v672 = vand.u32 %v671, 4294901760
    %673 = vmatpush1.msra.mxu0 %v672
    %674 = vmatprep.subr.mxu0 0.0
    %v675 = vand.u32 %v39, 4294901760
    %v676 = vsub.f32 %v39, %v675
    %v677 = vand.u32 %v676, 4294901760
    %678 = vmatpush1.msra.mxu0 %v677
    %679 = vmatprep.subr.mxu0 0.0
    %v680 = vand.u32 %v40, 4294901760
    %v681 = vsub.f32 %v40, %v680
    %v682 = vand.u32 %v681, 4294901760
    %683 = vmatpush1.msra.mxu0 %v682
    %684 = vmatprep.subr.mxu0 0.0
    %v685 = vand.u32 %v41, 4294901760
    %v686 = vsub.f32 %v41, %v685
    %v687 = vand.u32 %v686, 4294901760
    %688 = vmatpush1.msra.mxu0 %v687
    %689 = vmatprep.subr.mxu0 0.0
    %v690 = vand.u32 %v42, 4294901760
    %v691 = vsub.f32 %v42, %v690
    %v692 = vand.u32 %v691, 4294901760
    %693 = vmatpush1.msra.mxu0 %v692
    %694 = vmatprep.subr.mxu0 0.0
    %v695 = vand.u32 %v43, 4294901760
    %v696 = vsub.f32 %v43, %v695
    %v697 = vand.u32 %v696, 4294901760
    %698 = vmatpush1.msra.mxu0 %v697
    %699 = vmatprep.subr.mxu0 0.0
    %v700 = vand.u32 %v44, 4294901760
    %v701 = vsub.f32 %v44, %v700
    %v702 = vand.u32 %v701, 4294901760
    %703 = vmatpush1.msra.mxu0 %v702
    %704 = vmatprep.subr.mxu0 0.0
    %v705 = vand.u32 %v45, 4294901760
    %v706 = vsub.f32 %v45, %v705
    %v707 = vand.u32 %v706, 4294901760
    %708 = vmatpush1.msra.mxu0 %v707
    %709 = vmatprep.subr.mxu0 0.0
    %v710 = vand.u32 %v46, 4294901760
    %v711 = vsub.f32 %v46, %v710
    %v712 = vand.u32 %v711, 4294901760
    %713 = vmatpush1.msra.mxu0 %v712
    %714 = vmatprep.subr.mxu0 0.0
    %v715 = vand.u32 %v47, 4294901760
    %v716 = vsub.f32 %v47, %v715
    %v717 = vand.u32 %v716, 4294901760
    %718 = vmatpush1.msra.mxu0 %v717
    %719 = vmatprep.subr.mxu0 0.0
    %v720 = vand.u32 %v48, 4294901760
    %v721 = vsub.f32 %v48, %v720
    %v722 = vand.u32 %v721, 4294901760
    %723 = vmatpush1.msra.mxu0 %v722
    %724 = vmatprep.subr.mxu0 0.0
    %v725 = vand.u32 %v49, 4294901760
    %v726 = vsub.f32 %v49, %v725
    %v727 = vand.u32 %v726, 4294901760
    %728 = vmatpush1.msra.mxu0 %v727
    %729 = vmatprep.subr.mxu0 0.0
    %v730 = vand.u32 %v50, 4294901760
    %v731 = vsub.f32 %v50, %v730
    %v732 = vand.u32 %v731, 4294901760
    %733 = vmatpush1.msra.mxu0 %v732
    %734 = vmatprep.subr.mxu0 0.0
    %v735 = vand.u32 %v51, 4294901760
    %v736 = vsub.f32 %v51, %v735
    %v737 = vand.u32 %v736, 4294901760
    %738 = vmatpush1.msra.mxu0 %v737
    %739 = vmatprep.subr.mxu0 0.0
    %v740 = vand.u32 %v52, 4294901760
    %v741 = vsub.f32 %v52, %v740
    %v742 = vand.u32 %v741, 4294901760
    %743 = vmatpush1.msra.mxu0 %v742
    %744 = vmatprep.subr.mxu0 0.0
    %v745 = vand.u32 %v53, 4294901760
    %v746 = vsub.f32 %v53, %v745
    %v747 = vand.u32 %v746, 4294901760
    %748 = vmatpush1.msra.mxu0 %v747
    %749 = vmatprep.subr.mxu0 0.0
    %v750 = vand.u32 %v54, 4294901760
    %v751 = vsub.f32 %v54, %v750
    %v752 = vand.u32 %v751, 4294901760
    %753 = vmatpush1.msra.mxu0 %v752
    %754 = vmatprep.subr.mxu0 0.0
    %v755 = vand.u32 %v55, 4294901760
    %v756 = vsub.f32 %v55, %v755
    %v757 = vand.u32 %v756, 4294901760
    %758 = vmatpush1.msra.mxu0 %v757
    %759 = vmatprep.subr.mxu0 0.0
    %v760 = vand.u32 %v56, 4294901760
    %v761 = vsub.f32 %v56, %v760
    %v762 = vand.u32 %v761, 4294901760
    %763 = vmatpush1.msra.mxu0 %v762
    %764 = vmatprep.subr.mxu0 0.0
    %v765 = vand.u32 %v57, 4294901760
    %v766 = vsub.f32 %v57, %v765
    %v767 = vand.u32 %v766, 4294901760
    %768 = vmatpush1.msra.mxu0 %v767
    %769 = vmatprep.subr.mxu0 0.0
    %v770 = vand.u32 %v58, 4294901760
    %v771 = vsub.f32 %v58, %v770
    %v772 = vand.u32 %v771, 4294901760
    %773 = vmatpush1.msra.mxu0 %v772
    %774 = vmatprep.subr.mxu0 0.0
    %v775 = vand.u32 %v59, 4294901760
    %v776 = vsub.f32 %v59, %v775
    %v777 = vand.u32 %v776, 4294901760
    %778 = vmatpush1.msra.mxu0 %v777
    %779 = vmatprep.subr.mxu0 0.0
    %v780 = vand.u32 %v60, 4294901760
    %v781 = vsub.f32 %v60, %v780
    %v782 = vand.u32 %v781, 4294901760
    %783 = vmatpush1.msra.mxu0 %v782
    %784 = vmatprep.subr.mxu0 0.0
    %v785 = vand.u32 %v61, 4294901760
    %v786 = vsub.f32 %v61, %v785
    %v787 = vand.u32 %v786, 4294901760
    %788 = vmatpush1.msra.mxu0 %v787
    %789 = vmatprep.subr.mxu0 0.0
    %v790 = vand.u32 %v62, 4294901760
    %v791 = vsub.f32 %v62, %v790
    %v792 = vand.u32 %v791, 4294901760
    %793 = vmatpush1.msra.mxu0 %v792
    %794 = vmatprep.subr.mxu0 0.0
    %v795 = vand.u32 %v63, 4294901760
    %v796 = vsub.f32 %v63, %v795
    %v797 = vand.u32 %v796, 4294901760
    %798 = vmatpush1.msra.mxu0 %v797
    %799 = vmatprep.subr.mxu0 0.0
    %v800 = vand.u32 %v64, 4294901760
    %v801 = vsub.f32 %v64, %v800
    %v802 = vand.u32 %v801, 4294901760
    %803 = vmatpush1.msra.mxu0 %v802
    %804 = vmatprep.subr.mxu0 0.0
    %v805 = vand.u32 %v65, 4294901760
    %v806 = vsub.f32 %v65, %v805
    %v807 = vand.u32 %v806, 4294901760
    %808 = vmatpush1.msra.mxu0 %v807
    %809 = vmatprep.subr.mxu0 0.0
    %v810 = vand.u32 %v66, 4294901760
    %v811 = vsub.f32 %v66, %v810
    %v812 = vand.u32 %v811, 4294901760
    %813 = vmatpush1.msra.mxu0 %v812
    %814 = vmatprep.subr.mxu0 0.0
    %v815 = vand.u32 %v81, 4294901760
    %v816 = vsub.f32 %v81, %v815
    %v817 = vand.u32 %v816, 4294901760
    %818 = vmatpush1.msra.mxu0 %v817
    %819 = vmatprep.subr.mxu0 0.0
    %820 = vmatpush1.msra.mxu0 0.0
    %v821 = vand.u32 %v77, 4294901760
    %822 = vmatprep.mubr.f32.mxu0 %v821
    %v823 = vand.u32 %v35, 4294901760
    %824 = vmatmul.mubr.f32.gmra.mrb[0].mxu0 %v823
    %v825 = vpop.f32.mrb[0].mxu0
    %v826 = vadd.f32 %v661, %v825
    %v827 = vpop.f32.mrb[0].mxu0
    %828 = vdwg.mxu0
    %829 = vmatprep.subr.mxu0 0.0
    %v830 = vand.u32 %v37, 4294901760
    %831 = vmatpush1.msra.mxu0 %v830
    %832 = vmatprep.subr.mxu0 0.0
    %v833 = vand.u32 %v38, 4294901760
    %834 = vmatpush1.msra.mxu0 %v833
    %835 = vmatprep.subr.mxu0 0.0
    %v836 = vand.u32 %v39, 4294901760
    %837 = vmatpush1.msra.mxu0 %v836
    %838 = vmatprep.subr.mxu0 0.0
    %v839 = vand.u32 %v40, 4294901760
    %840 = vmatpush1.msra.mxu0 %v839
    %841 = vmatprep.subr.mxu0 0.0
    %v842 = vand.u32 %v41, 4294901760
    %843 = vmatpush1.msra.mxu0 %v842
    %844 = vmatprep.subr.mxu0 0.0
    %v845 = vand.u32 %v42, 4294901760
    %846 = vmatpush1.msra.mxu0 %v845
    %847 = vmatprep.subr.mxu0 0.0
    %v848 = vand.u32 %v43, 4294901760
    %849 = vmatpush1.msra.mxu0 %v848
    %850 = vmatprep.subr.mxu0 0.0
    %v851 = vand.u32 %v44, 4294901760
    %852 = vmatpush1.msra.mxu0 %v851
    %853 = vmatprep.subr.mxu0 0.0
    %v854 = vand.u32 %v45, 4294901760
    %855 = vmatpush1.msra.mxu0 %v854
    %856 = vmatprep.subr.mxu0 0.0
    %v857 = vand.u32 %v46, 4294901760
    %858 = vmatpush1.msra.mxu0 %v857
    %859 = vmatprep.subr.mxu0 0.0
    %v860 = vand.u32 %v47, 4294901760
    %861 = vmatpush1.msra.mxu0 %v860
    %862 = vmatprep.subr.mxu0 0.0
    %v863 = vand.u32 %v48, 4294901760
    %864 = vmatpush1.msra.mxu0 %v863
    %865 = vmatprep.subr.mxu0 0.0
    %v866 = vand.u32 %v49, 4294901760
    %867 = vmatpush1.msra.mxu0 %v866
    %868 = vmatprep.subr.mxu0 0.0
    %v869 = vand.u32 %v50, 4294901760
    %870 = vmatpush1.msra.mxu0 %v869
    %871 = vmatprep.subr.mxu0 0.0
    %v872 = vand.u32 %v51, 4294901760
    %873 = vmatpush1.msra.mxu0 %v872
    %874 = vmatprep.subr.mxu0 0.0
    %v875 = vand.u32 %v52, 4294901760
    %876 = vmatpush1.msra.mxu0 %v875
    %877 = vmatprep.subr.mxu0 0.0
    %v878 = vand.u32 %v53, 4294901760
    %879 = vmatpush1.msra.mxu0 %v878
    %880 = vmatprep.subr.mxu0 0.0
    %v881 = vand.u32 %v54, 4294901760
    %882 = vmatpush1.msra.mxu0 %v881
    %883 = vmatprep.subr.mxu0 0.0
    %v884 = vand.u32 %v55, 4294901760
    %885 = vmatpush1.msra.mxu0 %v884
    %886 = vmatprep.subr.mxu0 0.0
    %v887 = vand.u32 %v56, 4294901760
    %888 = vmatpush1.msra.mxu0 %v887
    %889 = vmatprep.subr.mxu0 0.0
    %v890 = vand.u32 %v57, 4294901760
    %891 = vmatpush1.msra.mxu0 %v890
    %892 = vmatprep.subr.mxu0 0.0
    %v893 = vand.u32 %v58, 4294901760
    %894 = vmatpush1.msra.mxu0 %v893
    %895 = vmatprep.subr.mxu0 0.0
    %v896 = vand.u32 %v59, 4294901760
    %897 = vmatpush1.msra.mxu0 %v896
    %898 = vmatprep.subr.mxu0 0.0
    %v899 = vand.u32 %v60, 4294901760
    %900 = vmatpush1.msra.mxu0 %v899
    %901 = vmatprep.subr.mxu0 0.0
    %v902 = vand.u32 %v61, 4294901760
    %903 = vmatpush1.msra.mxu0 %v902
    %904 = vmatprep.subr.mxu0 0.0
    %v905 = vand.u32 %v62, 4294901760
    %906 = vmatpush1.msra.mxu0 %v905
    %907 = vmatprep.subr.mxu0 0.0
    %v908 = vand.u32 %v63, 4294901760
    %909 = vmatpush1.msra.mxu0 %v908
    %910 = vmatprep.subr.mxu0 0.0
    %v911 = vand.u32 %v64, 4294901760
    %912 = vmatpush1.msra.mxu0 %v911
    %913 = vmatprep.subr.mxu0 0.0
    %v914 = vand.u32 %v65, 4294901760
    %915 = vmatpush1.msra.mxu0 %v914
    %916 = vmatprep.subr.mxu0 0.0
    %v917 = vand.u32 %v66, 4294901760
    %918 = vmatpush1.msra.mxu0 %v917
    %919 = vmatprep.subr.mxu0 0.0
    %v920 = vand.u32 %v81, 4294901760
    %921 = vmatpush1.msra.mxu0 %v920
    %922 = vmatprep.subr.mxu0 0.0
    %923 = vmatpush1.msra.mxu0 0.0
    %v924 = vand.u32 %v77, 4294901760
    %925 = vmatprep.mubr.f32.mxu0 %v924
    %v926 = vand.u32 %v35, 4294901760
    %927 = vmatmul.mubr.f32.gmra.mrb[0].mxu0 %v926
    %v928 = vpop.f32.mrb[0].mxu0
    %v929 = vadd.f32 %v826, %v928
    %v930 = vpop.f32.mrb[0].mxu0
    %931 = vdwg.mxu0
    %v932 = vmax.f32 %v929, 0.0
    %v933 = vld [vmem:[%s3] sm:$0xff]
    %v934 = vld [vmem:[%s3 + $0x8] sm:$0xff]
    %v935 = vld [vmem:[%s3 + $0x10] sm:$0xff]
    %v936 = vld [vmem:[%s3 + $0x18] sm:$0xff]
    %v937 = vld [vmem:[%s3 + $0x20] sm:$0xff]
    %v938 = vld [vmem:[%s3 + $0x28] sm:$0xff]
    %v939 = vld [vmem:[%s3 + $0x30] sm:$0xff]
    %v940 = vld [vmem:[%s3 + $0x38] sm:$0xff]
    %v941 = vld [vmem:[%s3 + $0x40] sm:$0xff]
    %v942 = vld [vmem:[%s3 + $0x48] sm:$0xff]
    %v943 = vld [vmem:[%s3 + $0x50] sm:$0xff]
    %v944 = vld [vmem:[%s3 + $0x58] sm:$0xff]
    %v945 = vld [vmem:[%s3 + $0x60] sm:$0xff]
    %v946 = vld [vmem:[%s3 + $0x68] sm:$0xff]
    %v947 = vld [vmem:[%s3 + $0x70] sm:$0xff]
    %v948 = vld [vmem:[%s3 + $0x78] sm:$0xff]
    %v949 = vld [vmem:[%s4] sm:$0x1]
    %v951 = vlaneseq
    %v952 = vshrl.u32 %v951, 7
    %v953 = vsub.s32 0, %v952
    %v954 = vrot.slane %v949, %v953
    %956 = vmatprep.subr.mxu0 0.0
    %v957 = vand.u32 %v933, 4294901760
    %958 = vmatpush1.msra.mxu0 %v957
    %959 = vmatprep.subr.mxu0 0.0
    %v960 = vand.u32 %v934, 4294901760
    %961 = vmatpush1.msra.mxu0 %v960
    %962 = vmatprep.subr.mxu0 0.0
    %v963 = vand.u32 %v935, 4294901760
    %964 = vmatpush1.msra.mxu0 %v963
    %965 = vmatprep.subr.mxu0 0.0
    %v966 = vand.u32 %v936, 4294901760
    %967 = vmatpush1.msra.mxu0 %v966
    %968 = vmatprep.subr.mxu0 0.0
    %v969 = vand.u32 %v937, 4294901760
    %970 = vmatpush1.msra.mxu0 %v969
    %971 = vmatprep.subr.mxu0 0.0
    %v972 = vand.u32 %v938, 4294901760
    %973 = vmatpush1.msra.mxu0 %v972
    %974 = vmatprep.subr.mxu0 0.0
    %v975 = vand.u32 %v939, 4294901760
    %976 = vmatpush1.msra.mxu0 %v975
    %977 = vmatprep.subr.mxu0 0.0
    %v978 = vand.u32 %v940, 4294901760
    %979 = vmatpush1.msra.mxu0 %v978
    %980 = vmatprep.subr.mxu0 0.0
    %v981 = vand.u32 %v941, 4294901760
    %982 = vmatpush1.msra.mxu0 %v981
    %983 = vmatprep.subr.mxu0 0.0
    %v984 = vand.u32 %v942, 4294901760
    %985 = vmatpush1.msra.mxu0 %v984
    %986 = vmatprep.subr.mxu0 0.0
    %v987 = vand.u32 %v943, 4294901760
    %988 = vmatpush1.msra.mxu0 %v987
    %989 = vmatprep.subr.mxu0 0.0
    %v990 = vand.u32 %v944, 4294901760
    %991 = vmatpush1.msra.mxu0 %v990
    %992 = vmatprep.subr.mxu0 0.0
    %v993 = vand.u32 %v945, 4294901760
    %994 = vmatpush1.msra.mxu0 %v993
    %995 = vmatprep.subr.mxu0 0.0
    %v996 = vand.u32 %v946, 4294901760
    %997 = vmatpush1.msra.mxu0 %v996
    %998 = vmatprep.subr.mxu0 0.0
    %v999 = vand.u32 %v947, 4294901760
    %1000 = vmatpush1.msra.mxu0 %v999
    %1001 = vmatprep.subr.mxu0 0.0
    %v1002 = vand.u32 %v948, 4294901760
    %1003 = vmatpush1.msra.mxu0 %v1002
    %1004 = vmatprep.subr.mxu0 0.0
    %1005 = vmatpush1.msra.mxu0 0.0
    %1006 = vmatprep.subr.mxu0 0.0
    %1007 = vmatpush1.msra.mxu0 0.0
    %1008 = vmatprep.subr.mxu0 0.0
    %1009 = vmatpush1.msra.mxu0 0.0
    %1010 = vmatprep.subr.mxu0 0.0
    %1011 = vmatpush1.msra.mxu0 0.0
    %1012 = vmatprep.subr.mxu0 0.0
    %1013 = vmatpush1.msra.mxu0 0.0
    %1014 = vmatprep.subr.mxu0 0.0
    %1015 = vmatpush1.msra.mxu0 0.0
    %1016 = vmatprep.subr.mxu0 0.0
    %1017 = vmatpush1.msra.mxu0 0.0
    %1018 = vmatprep.subr.mxu0 0.0
    %1019 = vmatpush1.msra.mxu0 0.0
    %1020 = vmatprep.subr.mxu0 0.0
    %1021 = vmatpush1.msra.mxu0 0.0
    %1022 = vmatprep.subr.mxu0 0.0
    %1023 = vmatpush1.msra.mxu0 0.0
    %1024 = vmatprep.subr.mxu0 0.0
    %1025 = vmatpush1.msra.mxu0 0.0
    %1026 = vmatprep.subr.mxu0 0.0
    %1027 = vmatpush1.msra.mxu0 0.0
    %1028 = vmatprep.subr.mxu0 0.0
    %1029 = vmatpush1.msra.mxu0 0.0
    %1030 = vmatprep.subr.mxu0 0.0
    %1031 = vmatpush1.msra.mxu0 0.0
    %1032 = vmatprep.subr.mxu0 0.0
    %1033 = vmatpush1.msra.mxu0 0.0
    %1034 = vmatprep.subr.mxu0 0.0
    %1035 = vmatpush1.msra.mxu0 0.0
    %1036 = vmatprep.mubr.f32.mxu0 0.0
    %v1037 = vand.u32 %v932, 4294901760
    %v1038 = vsub.f32 %v932, %v1037
    %v1039 = vand.u32 %v1038, 4294901760
    %v1040 = vsub.f32 %v1038, %v1039
    %v1041 = vand.u32 %v1040, 4294901760
    %1042 = vmatmul.mubr.f32.gmra.mrb[0].mxu0 %v1041
    %v1043 = vpop.f32.mrb[0].mxu0
    %v1044 = vadd.f32 %v954, %v1043
    %v1045 = vpop.f32.mrb[0].mxu0
    %1046 = vdwg.mxu0
    %1047 = vmatprep.subr.mxu0 0.0
    %v1048 = vand.u32 %v933, 4294901760
    %v1049 = vsub.f32 %v933, %v1048
    %v1050 = vand.u32 %v1049, 4294901760
    %v1051 = vsub.f32 %v1049, %v1050
    %v1052 = vand.u32 %v1051, 4294901760
    %1053 = vmatpush1.msra.mxu0 %v1052
    %1054 = vmatprep.subr.mxu0 0.0
    %v1055 = vand.u32 %v934, 4294901760
    %v1056 = vsub.f32 %v934, %v1055
    %v1057 = vand.u32 %v1056, 4294901760
    %v1058 = vsub.f32 %v1056, %v1057
    %v1059 = vand.u32 %v1058, 4294901760
    %1060 = vmatpush1.msra.mxu0 %v1059
    %1061 = vmatprep.subr.mxu0 0.0
    %v1062 = vand.u32 %v935, 4294901760
    %v1063 = vsub.f32 %v935, %v1062
    %v1064 = vand.u32 %v1063, 4294901760
    %v1065 = vsub.f32 %v1063, %v1064
    %v1066 = vand.u32 %v1065, 4294901760
    %1067 = vmatpush1.msra.mxu0 %v1066
    %1068 = vmatprep.subr.mxu0 0.0
    %v1069 = vand.u32 %v936, 4294901760
    %v1070 = vsub.f32 %v936, %v1069
    %v1071 = vand.u32 %v1070, 4294901760
    %v1072 = vsub.f32 %v1070, %v1071
    %v1073 = vand.u32 %v1072, 4294901760
    %1074 = vmatpush1.msra.mxu0 %v1073
    %1075 = vmatprep.subr.mxu0 0.0
    %v1076 = vand.u32 %v937, 4294901760
    %v1077 = vsub.f32 %v937, %v1076
    %v1078 = vand.u32 %v1077, 4294901760
    %v1079 = vsub.f32 %v1077, %v1078
    %v1080 = vand.u32 %v1079, 4294901760
    %1081 = vmatpush1.msra.mxu0 %v1080
    %1082 = vmatprep.subr.mxu0 0.0
    %v1083 = vand.u32 %v938, 4294901760
    %v1084 = vsub.f32 %v938, %v1083
    %v1085 = vand.u32 %v1084, 4294901760
    %v1086 = vsub.f32 %v1084, %v1085
    %v1087 = vand.u32 %v1086, 4294901760
    %1088 = vmatpush1.msra.mxu0 %v1087
    %1089 = vmatprep.subr.mxu0 0.0
    %v1090 = vand.u32 %v939, 4294901760
    %v1091 = vsub.f32 %v939, %v1090
    %v1092 = vand.u32 %v1091, 4294901760
    %v1093 = vsub.f32 %v1091, %v1092
    %v1094 = vand.u32 %v1093, 4294901760
    %1095 = vmatpush1.msra.mxu0 %v1094
    %1096 = vmatprep.subr.mxu0 0.0
    %v1097 = vand.u32 %v940, 4294901760
    %v1098 = vsub.f32 %v940, %v1097
    %v1099 = vand.u32 %v1098, 4294901760
    %v1100 = vsub.f32 %v1098, %v1099
    %v1101 = vand.u32 %v1100, 4294901760
    %1102 = vmatpush1.msra.mxu0 %v1101
    %1103 = vmatprep.subr.mxu0 0.0
    %v1104 = vand.u32 %v941, 4294901760
    %v1105 = vsub.f32 %v941, %v1104
    %v1106 = vand.u32 %v1105, 4294901760
    %v1107 = vsub.f32 %v1105, %v1106
    %v1108 = vand.u32 %v1107, 4294901760
    %1109 = vmatpush1.msra.mxu0 %v1108
    %1110 = vmatprep.subr.mxu0 0.0
    %v1111 = vand.u32 %v942, 4294901760
    %v1112 = vsub.f32 %v942, %v1111
    %v1113 = vand.u32 %v1112, 4294901760
    %v1114 = vsub.f32 %v1112, %v1113
    %v1115 = vand.u32 %v1114, 4294901760
    %1116 = vmatpush1.msra.mxu0 %v1115
    %1117 = vmatprep.subr.mxu0 0.0
    %v1118 = vand.u32 %v943, 4294901760
    %v1119 = vsub.f32 %v943, %v1118
    %v1120 = vand.u32 %v1119, 4294901760
    %v1121 = vsub.f32 %v1119, %v1120
    %v1122 = vand.u32 %v1121, 4294901760
    %1123 = vmatpush1.msra.mxu0 %v1122
    %1124 = vmatprep.subr.mxu0 0.0
    %v1125 = vand.u32 %v944, 4294901760
    %v1126 = vsub.f32 %v944, %v1125
    %v1127 = vand.u32 %v1126, 4294901760
    %v1128 = vsub.f32 %v1126, %v1127
    %v1129 = vand.u32 %v1128, 4294901760
    %1130 = vmatpush1.msra.mxu0 %v1129
    %1131 = vmatprep.subr.mxu0 0.0
    %v1132 = vand.u32 %v945, 4294901760
    %v1133 = vsub.f32 %v945, %v1132
    %v1134 = vand.u32 %v1133, 4294901760
    %v1135 = vsub.f32 %v1133, %v1134
    %v1136 = vand.u32 %v1135, 4294901760
    %1137 = vmatpush1.msra.mxu0 %v1136
    %1138 = vmatprep.subr.mxu0 0.0
    %v1139 = vand.u32 %v946, 4294901760
    %v1140 = vsub.f32 %v946, %v1139
    %v1141 = vand.u32 %v1140, 4294901760
    %v1142 = vsub.f32 %v1140, %v1141
    %v1143 = vand.u32 %v1142, 4294901760
    %1144 = vmatpush1.msra.mxu0 %v1143
    %1145 = vmatprep.subr.mxu0 0.0
    %v1146 = vand.u32 %v947, 4294901760
    %v1147 = vsub.f32 %v947, %v1146
    %v1148 = vand.u32 %v1147, 4294901760
    %v1149 = vsub.f32 %v1147, %v1148
    %v1150 = vand.u32 %v1149, 4294901760
    %1151 = vmatpush1.msra.mxu0 %v1150
    %1152 = vmatprep.subr.mxu0 0.0
    %v1153 = vand.u32 %v948, 4294901760
    %v1154 = vsub.f32 %v948, %v1153
    %v1155 = vand.u32 %v1154, 4294901760
    %v1156 = vsub.f32 %v1154, %v1155
    %v1157 = vand.u32 %v1156, 4294901760
    %1158 = vmatpush1.msra.mxu0 %v1157
    %1159 = vmatprep.subr.mxu0 0.0
    %1160 = vmatpush1.msra.mxu0 0.0
    %1161 = vmatprep.subr.mxu0 0.0
    %1162 = vmatpush1.msra.mxu0 0.0
    %1163 = vmatprep.subr.mxu0 0.0
    %1164 = vmatpush1.msra.mxu0 0.0
    %1165 = vmatprep.subr.mxu0 0.0
    %1166 = vmatpush1.msra.mxu0 0.0
    %1167 = vmatprep.subr.mxu0 0.0
    %1168 = vmatpush1.msra.mxu0 0.0
    %1169 = vmatprep.subr.mxu0 0.0
    %1170 = vmatpush1.msra.mxu0 0.0
    %1171 = vmatprep.subr.mxu0 0.0
    %1172 = vmatpush1.msra.mxu0 0.0
    %1173 = vmatprep.subr.mxu0 0.0
    %1174 = vmatpush1.msra.mxu0 0.0
    %1175 = vmatprep.subr.mxu0 0.0
    %1176 = vmatpush1.msra.mxu0 0.0
    %1177 = vmatprep.subr.mxu0 0.0
    %1178 = vmatpush1.msra.mxu0 0.0
    %1179 = vmatprep.subr.mxu0 0.0
    %1180 = vmatpush1.msra.mxu0 0.0
    %1181 = vmatprep.subr.mxu0 0.0
    %1182 = vmatpush1.msra.mxu0 0.0
    %1183 = vmatprep.subr.mxu0 0.0
    %1184 = vmatpush1.msra.mxu0 0.0
    %1185 = vmatprep.subr.mxu0 0.0
    %1186 = vmatpush1.msra.mxu0 0.0
    %1187 = vmatprep.subr.mxu0 0.0
    %1188 = vmatpush1.msra.mxu0 0.0
    %1189 = vmatprep.subr.mxu0 0.0
    %1190 = vmatpush1.msra.mxu0 0.0
    %1191 = vmatprep.mubr.f32.mxu0 0.0
    %v1192 = vand.u32 %v932, 4294901760
    %1193 = vmatmul.mubr.f32.gmra.mrb[0].mxu0 %v1192
    %v1194 = vpop.f32.mrb[0].mxu0
    %v1195 = vadd.f32 %v1044, %v1194
    %v1196 = vpop.f32.mrb[0].mxu0
    %1197 = vdwg.mxu0
    %1198 = vmatprep.subr.mxu0 0.0
    %v1199 = vand.u32 %v933, 4294901760
    %v1200 = vsub.f32 %v933, %v1199
    %1201 = vmatpush1.msra.mxu0 %v1200
    %1202 = vmatprep.subr.mxu0 0.0
    %v1203 = vand.u32 %v934, 4294901760
    %v1204 = vsub.f32 %v934, %v1203
    %1205 = vmatpush1.msra.mxu0 %v1204
    %1206 = vmatprep.subr.mxu0 0.0
    %v1207 = vand.u32 %v935, 4294901760
    %v1208 = vsub.f32 %v935, %v1207
    %1209 = vmatpush1.msra.mxu0 %v1208
    %1210 = vmatprep.subr.mxu0 0.0
    %v1211 = vand.u32 %v936, 4294901760
    %v1212 = vsub.f32 %v936, %v1211
    %1213 = vmatpush1.msra.mxu0 %v1212
    %1214 = vmatprep.subr.mxu0 0.0
    %v1215 = vand.u32 %v937, 4294901760
    %v1216 = vsub.f32 %v937, %v1215
    %1217 = vmatpush1.msra.mxu0 %v1216
    %1218 = vmatprep.subr.mxu0 0.0
    %v1219 = vand.u32 %v938, 4294901760
    %v1220 = vsub.f32 %v938, %v1219
    %1221 = vmatpush1.msra.mxu0 %v1220
    %1222 = vmatprep.subr.mxu0 0.0
    %v1223 = vand.u32 %v939, 4294901760
    %v1224 = vsub.f32 %v939, %v1223
    %1225 = vmatpush1.msra.mxu0 %v1224
    %1226 = vmatprep.subr.mxu0 0.0
    %v1227 = vand.u32 %v940, 4294901760
    %v1228 = vsub.f32 %v940, %v1227
    %1229 = vmatpush1.msra.mxu0 %v1228
    %1230 = vmatprep.subr.mxu0 0.0
    %v1231 = vand.u32 %v941, 4294901760
    %v1232 = vsub.f32 %v941, %v1231
    %1233 = vmatpush1.msra.mxu0 %v1232
    %1234 = vmatprep.subr.mxu0 0.0
    %v1235 = vand.u32 %v942, 4294901760
    %v1236 = vsub.f32 %v942, %v1235
    %1237 = vmatpush1.msra.mxu0 %v1236
    %1238 = vmatprep.subr.mxu0 0.0
    %v1239 = vand.u32 %v943, 4294901760
    %v1240 = vsub.f32 %v943, %v1239
    %1241 = vmatpush1.msra.mxu0 %v1240
    %1242 = vmatprep.subr.mxu0 0.0
    %v1243 = vand.u32 %v944, 4294901760
    %v1244 = vsub.f32 %v944, %v1243
    %1245 = vmatpush1.msra.mxu0 %v1244
    %1246 = vmatprep.subr.mxu0 0.0
    %v1247 = vand.u32 %v945, 4294901760
    %v1248 = vsub.f32 %v945, %v1247
    %1249 = vmatpush1.msra.mxu0 %v1248
    %1250 = vmatprep.subr.mxu0 0.0
    %v1251 = vand.u32 %v946, 4294901760
    %v1252 = vsub.f32 %v946, %v1251
    %1253 = vmatpush1.msra.mxu0 %v1252
    %1254 = vmatprep.subr.mxu0 0.0
    %v1255 = vand.u32 %v947, 4294901760
    %v1256 = vsub.f32 %v947, %v1255
    %1257 = vmatpush1.msra.mxu0 %v1256
    %1258 = vmatprep.subr.mxu0 0.0
    %v1259 = vand.u32 %v948, 4294901760
    %v1260 = vsub.f32 %v948, %v1259
    %1261 = vmatpush1.msra.mxu0 %v1260
    %1262 = vmatprep.subr.mxu0 0.0
    %1263 = vmatpush1.msra.mxu0 0.0
    %1264 = vmatprep.subr.mxu0 0.0
    %1265 = vmatpush1.msra.mxu0 0.0
    %1266 = vmatprep.subr.mxu0 0.0
    %1267 = vmatpush1.msra.mxu0 0.0
    %1268 = vmatprep.subr.mxu0 0.0
    %1269 = vmatpush1.msra.mxu0 0.0
    %1270 = vmatprep.subr.mxu0 0.0
    %1271 = vmatpush1.msra.mxu0 0.0
    %1272 = vmatprep.subr.mxu0 0.0
    %1273 = vmatpush1.msra.mxu0 0.0
    %1274 = vmatprep.subr.mxu0 0.0
    %1275 = vmatpush1.msra.mxu0 0.0
    %1276 = vmatprep.subr.mxu0 0.0
    %1277 = vmatpush1.msra.mxu0 0.0
    %1278 = vmatprep.subr.mxu0 0.0
    %1279 = vmatpush1.msra.mxu0 0.0
    %1280 = vmatprep.subr.mxu0 0.0
    %1281 = vmatpush1.msra.mxu0 0.0
    %1282 = vmatprep.subr.mxu0 0.0
    %1283 = vmatpush1.msra.mxu0 0.0
    %1284 = vmatprep.subr.mxu0 0.0
    %1285 = vmatpush1.msra.mxu0 0.0
    %1286 = vmatprep.subr.mxu0 0.0
    %1287 = vmatpush1.msra.mxu0 0.0
    %1288 = vmatprep.subr.mxu0 0.0
    %1289 = vmatpush1.msra.mxu0 0.0
    %1290 = vmatprep.subr.mxu0 0.0
    %1291 = vmatpush1.msra.mxu0 0.0
    %1292 = vmatprep.subr.mxu0 0.0
    %1293 = vmatpush1.msra.mxu0 0.0
    %1294 = vmatprep.mubr.f32.mxu0 0.0
    %v1295 = vand.u32 %v932, 4294901760
    %v1296 = vsub.f32 %v932, %v1295
    %1297 = vmatmul.mubr.f32.gmra.mrb[0].mxu0 %v1296
    %v1298 = vpop.f32.mrb[0].mxu0
    %v1299 = vadd.f32 %v1195, %v1298
    %v1300 = vpop.f32.mrb[0].mxu0
    %1301 = vdwg.mxu0
    %1302 = vmatprep.subr.mxu0 0.0
    %v1303 = vand.u32 %v933, 4294901760
    %1304 = vmatpush1.msra.mxu0 %v1303
    %1305 = vmatprep.subr.mxu0 0.0
    %v1306 = vand.u32 %v934, 4294901760
    %1307 = vmatpush1.msra.mxu0 %v1306
    %1308 = vmatprep.subr.mxu0 0.0
    %v1309 = vand.u32 %v935, 4294901760
    %1310 = vmatpush1.msra.mxu0 %v1309
    %1311 = vmatprep.subr.mxu0 0.0
    %v1312 = vand.u32 %v936, 4294901760
    %1313 = vmatpush1.msra.mxu0 %v1312
    %1314 = vmatprep.subr.mxu0 0.0
    %v1315 = vand.u32 %v937, 4294901760
    %1316 = vmatpush1.msra.mxu0 %v1315
    %1317 = vmatprep.subr.mxu0 0.0
    %v1318 = vand.u32 %v938, 4294901760
    %1319 = vmatpush1.msra.mxu0 %v1318
    %1320 = vmatprep.subr.mxu0 0.0
    %v1321 = vand.u32 %v939, 4294901760
    %1322 = vmatpush1.msra.mxu0 %v1321
    %1323 = vmatprep.subr.mxu0 0.0
    %v1324 = vand.u32 %v940, 4294901760
    %1325 = vmatpush1.msra.mxu0 %v1324
    %1326 = vmatprep.subr.mxu0 0.0
    %v1327 = vand.u32 %v941, 4294901760
    %1328 = vmatpush1.msra.mxu0 %v1327
    %1329 = vmatprep.subr.mxu0 0.0
    %v1330 = vand.u32 %v942, 4294901760
    %1331 = vmatpush1.msra.mxu0 %v1330
    %1332 = vmatprep.subr.mxu0 0.0
    %v1333 = vand.u32 %v943, 4294901760
    %1334 = vmatpush1.msra.mxu0 %v1333
    %1335 = vmatprep.subr.mxu0 0.0
    %v1336 = vand.u32 %v944, 4294901760
    %1337 = vmatpush1.msra.mxu0 %v1336
    %1338 = vmatprep.subr.mxu0 0.0
    %v1339 = vand.u32 %v945, 4294901760
    %1340 = vmatpush1.msra.mxu0 %v1339
    %1341 = vmatprep.subr.mxu0 0.0
    %v1342 = vand.u32 %v946, 4294901760
    %1343 = vmatpush1.msra.mxu0 %v1342
    %1344 = vmatprep.subr.mxu0 0.0
    %v1345 = vand.u32 %v947, 4294901760
    %1346 = vmatpush1.msra.mxu0 %v1345
    %1347 = vmatprep.subr.mxu0 0.0
    %v1348 = vand.u32 %v948, 4294901760
    %1349 = vmatpush1.msra.mxu0 %v1348
    %1350 = vmatprep.subr.mxu0 0.0
    %1351 = vmatpush1.msra.mxu0 0.0
    %1352 = vmatprep.subr.mxu0 0.0
    %1353 = vmatpush1.msra.mxu0 0.0
    %1354 = vmatprep.subr.mxu0 0.0
    %1355 = vmatpush1.msra.mxu0 0.0
    %1356 = vmatprep.subr.mxu0 0.0
    %1357 = vmatpush1.msra.mxu0 0.0
    %1358 = vmatprep.subr.mxu0 0.0
    %1359 = vmatpush1.msra.mxu0 0.0
    %1360 = vmatprep.subr.mxu0 0.0
    %1361 = vmatpush1.msra.mxu0 0.0
    %1362 = vmatprep.subr.mxu0 0.0
    %1363 = vmatpush1.msra.mxu0 0.0
    %1364 = vmatprep.subr.mxu0 0.0
    %1365 = vmatpush1.msra.mxu0 0.0
    %1366 = vmatprep.subr.mxu0 0.0
    %1367 = vmatpush1.msra.mxu0 0.0
    %1368 = vmatprep.subr.mxu0 0.0
    %1369 = vmatpush1.msra.mxu0 0.0
    %1370 = vmatprep.subr.mxu0 0.0
    %1371 = vmatpush1.msra.mxu0 0.0
    %1372 = vmatprep.subr.mxu0 0.0
    %1373 = vmatpush1.msra.mxu0 0.0
    %1374 = vmatprep.subr.mxu0 0.0
    %1375 = vmatpush1.msra.mxu0 0.0
    %1376 = vmatprep.subr.mxu0 0.0
    %1377 = vmatpush1.msra.mxu0 0.0
    %1378 = vmatprep.subr.mxu0 0.0
    %1379 = vmatpush1.msra.mxu0 0.0
    %1380 = vmatprep.subr.mxu0 0.0
    %1381 = vmatpush1.msra.mxu0 0.0
    %1382 = vmatprep.mubr.f32.mxu0 0.0
    %v1383 = vand.u32 %v932, 4294901760
    %v1384 = vsub.f32 %v932, %v1383
    %v1385 = vand.u32 %v1384, 4294901760
    %1386 = vmatmul.mubr.f32.gmra.mrb[0].mxu0 %v1385
    %v1387 = vpop.f32.mrb[0].mxu0
    %v1388 = vadd.f32 %v1299, %v1387
    %v1389 = vpop.f32.mrb[0].mxu0
    %1390 = vdwg.mxu0
    %1391 = vmatprep.subr.mxu0 0.0
    %v1392 = vand.u32 %v933, 4294901760
    %v1393 = vsub.f32 %v933, %v1392
    %v1394 = vand.u32 %v1393, 4294901760
    %1395 = vmatpush1.msra.mxu0 %v1394
    %1396 = vmatprep.subr.mxu0 0.0
    %v1397 = vand.u32 %v934, 4294901760
    %v1398 = vsub.f32 %v934, %v1397
    %v1399 = vand.u32 %v1398, 4294901760
    %1400 = vmatpush1.msra.mxu0 %v1399
    %1401 = vmatprep.subr.mxu0 0.0
    %v1402 = vand.u32 %v935, 4294901760
    %v1403 = vsub.f32 %v935, %v1402
    %v1404 = vand.u32 %v1403, 4294901760
    %1405 = vmatpush1.msra.mxu0 %v1404
    %1406 = vmatprep.subr.mxu0 0.0
    %v1407 = vand.u32 %v936, 4294901760
    %v1408 = vsub.f32 %v936, %v1407
    %v1409 = vand.u32 %v1408, 4294901760
    %1410 = vmatpush1.msra.mxu0 %v1409
    %1411 = vmatprep.subr.mxu0 0.0
    %v1412 = vand.u32 %v937, 4294901760
    %v1413 = vsub.f32 %v937, %v1412
    %v1414 = vand.u32 %v1413, 4294901760
    %1415 = vmatpush1.msra.mxu0 %v1414
    %1416 = vmatprep.subr.mxu0 0.0
    %v1417 = vand.u32 %v938, 4294901760
    %v1418 = vsub.f32 %v938, %v1417
    %v1419 = vand.u32 %v1418, 4294901760
    %1420 = vmatpush1.msra.mxu0 %v1419
    %1421 = vmatprep.subr.mxu0 0.0
    %v1422 = vand.u32 %v939, 4294901760
    %v1423 = vsub.f32 %v939, %v1422
    %v1424 = vand.u32 %v1423, 4294901760
    %1425 = vmatpush1.msra.mxu0 %v1424
    %1426 = vmatprep.subr.mxu0 0.0
    %v1427 = vand.u32 %v940, 4294901760
    %v1428 = vsub.f32 %v940, %v1427
    %v1429 = vand.u32 %v1428, 4294901760
    %1430 = vmatpush1.msra.mxu0 %v1429
    %1431 = vmatprep.subr.mxu0 0.0
    %v1432 = vand.u32 %v941, 4294901760
    %v1433 = vsub.f32 %v941, %v1432
    %v1434 = vand.u32 %v1433, 4294901760
    %1435 = vmatpush1.msra.mxu0 %v1434
    %1436 = vmatprep.subr.mxu0 0.0
    %v1437 = vand.u32 %v942, 4294901760
    %v1438 = vsub.f32 %v942, %v1437
    %v1439 = vand.u32 %v1438, 4294901760
    %1440 = vmatpush1.msra.mxu0 %v1439
    %1441 = vmatprep.subr.mxu0 0.0
    %v1442 = vand.u32 %v943, 4294901760
    %v1443 = vsub.f32 %v943, %v1442
    %v1444 = vand.u32 %v1443, 4294901760
    %1445 = vmatpush1.msra.mxu0 %v1444
    %1446 = vmatprep.subr.mxu0 0.0
    %v1447 = vand.u32 %v944, 4294901760
    %v1448 = vsub.f32 %v944, %v1447
    %v1449 = vand.u32 %v1448, 4294901760
    %1450 = vmatpush1.msra.mxu0 %v1449
    %1451 = vmatprep.subr.mxu0 0.0
    %v1452 = vand.u32 %v945, 4294901760
    %v1453 = vsub.f32 %v945, %v1452
    %v1454 = vand.u32 %v1453, 4294901760
    %1455 = vmatpush1.msra.mxu0 %v1454
    %1456 = vmatprep.subr.mxu0 0.0
    %v1457 = vand.u32 %v946, 4294901760
    %v1458 = vsub.f32 %v946, %v1457
    %v1459 = vand.u32 %v1458, 4294901760
    %1460 = vmatpush1.msra.mxu0 %v1459
    %1461 = vmatprep.subr.mxu0 0.0
    %v1462 = vand.u32 %v947, 4294901760
    %v1463 = vsub.f32 %v947, %v1462
    %v1464 = vand.u32 %v1463, 4294901760
    %1465 = vmatpush1.msra.mxu0 %v1464
    %1466 = vmatprep.subr.mxu0 0.0
    %v1467 = vand.u32 %v948, 4294901760
    %v1468 = vsub.f32 %v948, %v1467
    %v1469 = vand.u32 %v1468, 4294901760
    %1470 = vmatpush1.msra.mxu0 %v1469
    %1471 = vmatprep.subr.mxu0 0.0
    %1472 = vmatpush1.msra.mxu0 0.0
    %1473 = vmatprep.subr.mxu0 0.0
    %1474 = vmatpush1.msra.mxu0 0.0
    %1475 = vmatprep.subr.mxu0 0.0
    %1476 = vmatpush1.msra.mxu0 0.0
    %1477 = vmatprep.subr.mxu0 0.0
    %1478 = vmatpush1.msra.mxu0 0.0
    %1479 = vmatprep.subr.mxu0 0.0
    %1480 = vmatpush1.msra.mxu0 0.0
    %1481 = vmatprep.subr.mxu0 0.0
    %1482 = vmatpush1.msra.mxu0 0.0
    %1483 = vmatprep.subr.mxu0 0.0
    %1484 = vmatpush1.msra.mxu0 0.0
    %1485 = vmatprep.subr.mxu0 0.0
    %1486 = vmatpush1.msra.mxu0 0.0
    %1487 = vmatprep.subr.mxu0 0.0
    %1488 = vmatpush1.msra.mxu0 0.0
    %1489 = vmatprep.subr.mxu0 0.0
    %1490 = vmatpush1.msra.mxu0 0.0
    %1491 = vmatprep.subr.mxu0 0.0
    %1492 = vmatpush1.msra.mxu0 0.0
    %1493 = vmatprep.subr.mxu0 0.0
    %1494 = vmatpush1.msra.mxu0 0.0
    %1495 = vmatprep.subr.mxu0 0.0
    %1496 = vmatpush1.msra.mxu0 0.0
    %1497 = vmatprep.subr.mxu0 0.0
    %1498 = vmatpush1.msra.mxu0 0.0
    %1499 = vmatprep.subr.mxu0 0.0
    %1500 = vmatpush1.msra.mxu0 0.0
    %1501 = vmatprep.subr.mxu0 0.0
    %1502 = vmatpush1.msra.mxu0 0.0
    %1503 = vmatprep.mubr.f32.mxu0 0.0
    %v1504 = vand.u32 %v932, 4294901760
    %1505 = vmatmul.mubr.f32.gmra.mrb[0].mxu0 %v1504
    %v1506 = vpop.f32.mrb[0].mxu0
    %v1507 = vadd.f32 %v1388, %v1506
    %v1508 = vpop.f32.mrb[0].mxu0
    %1509 = vdwg.mxu0
    %1510 = vmatprep.subr.mxu0 0.0
    %v1511 = vand.u32 %v933, 4294901760
    %1512 = vmatpush1.msra.mxu0 %v1511
    %1513 = vmatprep.subr.mxu0 0.0
    %v1514 = vand.u32 %v934, 4294901760
    %1515 = vmatpush1.msra.mxu0 %v1514
    %1516 = vmatprep.subr.mxu0 0.0
    %v1517 = vand.u32 %v935, 4294901760
    %1518 = vmatpush1.msra.mxu0 %v1517
    %1519 = vmatprep.subr.mxu0 0.0
    %v1520 = vand.u32 %v936, 4294901760
    %1521 = vmatpush1.msra.mxu0 %v1520
    %1522 = vmatprep.subr.mxu0 0.0
    %v1523 = vand.u32 %v937, 4294901760
    %1524 = vmatpush1.msra.mxu0 %v1523
    %1525 = vmatprep.subr.mxu0 0.0
    %v1526 = vand.u32 %v938, 4294901760
    %1527 = vmatpush1.msra.mxu0 %v1526
    %1528 = vmatprep.subr.mxu0 0.0
    %v1529 = vand.u32 %v939, 4294901760
    %1530 = vmatpush1.msra.mxu0 %v1529
    %1531 = vmatprep.subr.mxu0 0.0
    %v1532 = vand.u32 %v940, 4294901760
    %1533 = vmatpush1.msra.mxu0 %v1532
    %1534 = vmatprep.subr.mxu0 0.0
    %v1535 = vand.u32 %v941, 4294901760
    %1536 = vmatpush1.msra.mxu0 %v1535
    %1537 = vmatprep.subr.mxu0 0.0
    %v1538 = vand.u32 %v942, 4294901760
    %1539 = vmatpush1.msra.mxu0 %v1538
    %1540 = vmatprep.subr.mxu0 0.0
    %v1541 = vand.u32 %v943, 4294901760
    %1542 = vmatpush1.msra.mxu0 %v1541
    %1543 = vmatprep.subr.mxu0 0.0
    %v1544 = vand.u32 %v944, 4294901760
    %1545 = vmatpush1.msra.mxu0 %v1544
    %1546 = vmatprep.subr.mxu0 0.0
    %v1547 = vand.u32 %v945, 4294901760
    %1548 = vmatpush1.msra.mxu0 %v1547
    %1549 = vmatprep.subr.mxu0 0.0
    %v1550 = vand.u32 %v946, 4294901760
    %1551 = vmatpush1.msra.mxu0 %v1550
    %1552 = vmatprep.subr.mxu0 0.0
    %v1553 = vand.u32 %v947, 4294901760
    %1554 = vmatpush1.msra.mxu0 %v1553
    %1555 = vmatprep.subr.mxu0 0.0
    %v1556 = vand.u32 %v948, 4294901760
    %1557 = vmatpush1.msra.mxu0 %v1556
    %1558 = vmatprep.subr.mxu0 0.0
    %1559 = vmatpush1.msra.mxu0 0.0
    %1560 = vmatprep.subr.mxu0 0.0
    %1561 = vmatpush1.msra.mxu0 0.0
    %1562 = vmatprep.subr.mxu0 0.0
    %1563 = vmatpush1.msra.mxu0 0.0
    %1564 = vmatprep.subr.mxu0 0.0
    %1565 = vmatpush1.msra.mxu0 0.0
    %1566 = vmatprep.subr.mxu0 0.0
    %1567 = vmatpush1.msra.mxu0 0.0
    %1568 = vmatprep.subr.mxu0 0.0
    %1569 = vmatpush1.msra.mxu0 0.0
    %1570 = vmatprep.subr.mxu0 0.0
    %1571 = vmatpush1.msra.mxu0 0.0
    %1572 = vmatprep.subr.mxu0 0.0
    %1573 = vmatpush1.msra.mxu0 0.0
    %1574 = vmatprep.subr.mxu0 0.0
    %1575 = vmatpush1.msra.mxu0 0.0
    %1576 = vmatprep.subr.mxu0 0.0
    %1577 = vmatpush1.msra.mxu0 0.0
    %1578 = vmatprep.subr.mxu0 0.0
    %1579 = vmatpush1.msra.mxu0 0.0
    %1580 = vmatprep.subr.mxu0 0.0
    %1581 = vmatpush1.msra.mxu0 0.0
    %1582 = vmatprep.subr.mxu0 0.0
    %1583 = vmatpush1.msra.mxu0 0.0
    %1584 = vmatprep.subr.mxu0 0.0
    %1585 = vmatpush1.msra.mxu0 0.0
    %1586 = vmatprep.subr.mxu0 0.0
    %1587 = vmatpush1.msra.mxu0 0.0
    %1588 = vmatprep.subr.mxu0 0.0
    %1589 = vmatpush1.msra.mxu0 0.0
    %1590 = vmatprep.mubr.f32.mxu0 0.0
    %v1591 = vand.u32 %v932, 4294901760
    %1592 = vmatmul.mubr.f32.gmra.mrb[0].mxu0 %v1591
    %v1593 = vpop.f32.mrb[0].mxu0
    %v1594 = vadd.f32 %v1507, %v1593
    %v1595 = vpop.f32.mrb[0].mxu0
    %1596 = vdwg.mxu0
    %1597 = vxpose.xlu0.b32.start [1/16] %v1594, 128
    %1598 = vxpose.xlu0.b32.cont [2/16] 0.0, 128
    %1599 = vxpose.xlu0.b32.cont [3/16] 0.0, 128
    %1600 = vxpose.xlu0.b32.cont [4/16] 0.0, 128
    %1601 = vxpose.xlu0.b32.cont [5/16] 0.0, 128
    %1602 = vxpose.xlu0.b32.cont [6/16] 0.0, 128
    %1603 = vxpose.xlu0.b32.cont [7/16] 0.0, 128
    %1604 = vxpose.xlu0.b32.cont [8/16] 0.0, 128
    %1605 = vxpose.xlu0.b32.cont [9/16] 0.0, 128
    %1606 = vxpose.xlu0.b32.cont [10/16] 0.0, 128
    %1607 = vxpose.xlu0.b32.cont [11/16] 0.0, 128
    %1608 = vxpose.xlu0.b32.cont [12/16] 0.0, 128
    %1609 = vxpose.xlu0.b32.cont [13/16] 0.0, 128
    %1610 = vxpose.xlu0.b32.cont [14/16] 0.0, 128
    %1611 = vxpose.xlu0.b32.cont [15/16] 0.0, 128
    %1612 = vxpose.xlu0.b32.end [16/16] 0.0, 128
    %v1613 = vpop.trf.xlu0
    %v1614 = vpop.trf.xlu0
    %v1615 = vpop.trf.xlu0
    %v1616 = vpop.trf.xlu0
    %v1617 = vpop.trf.xlu0
    %v1618 = vpop.trf.xlu0
    %v1619 = vpop.trf.xlu0
    %v1620 = vpop.trf.xlu0
    %v1621 = vpop.trf.xlu0
    %v1622 = vpop.trf.xlu0
    %v1623 = vpop.trf.xlu0
    %v1624 = vpop.trf.xlu0
    %v1625 = vpop.trf.xlu0
    %v1626 = vpop.trf.xlu0
    %v1627 = vpop.trf.xlu0
    %v1628 = vpop.trf.xlu0
    %vm1629 = vcmask 59392
    %1630 = vst.msk [vmem:[#allocation5] sm:$0x7] %vm1629, %v1613
    // Predicated region
    $region26: #{laser_regression_forward.1} parent=1 // pred_check
      _
    $region27: #{laser_regression_forward.1} parent=1 // pred_check_branch
      %1632 = sbr.rel (0) target = $region29
    $region28: #{laser_regression_forward.1} parent=1 // pred_region
      %s1634 = ssub.s32 64, 64
      %1635 = vsyncadd [#allocation4], %s1634
      %s1637 = sshll.u32 [#allocation5], 4
      %s1638 = int_to_ptr.vmem [resolvable:$true] %s1637
      %1640 = dma.vmem_to_hbm [thread:$0]  %s1638, 64, %s5, [#allocation4]
    $region29: #{laser_regression_forward.1} parent=1 // pred_fallthru
      _
    // Predicated region
    $region30: #{laser_regression_forward.1} parent=1 // pred_check
      _
    $region31: #{laser_regression_forward.1} parent=1 // pred_check_branch
      %1642 = sbr.rel (0) target = $region33
    $region32: #{laser_regression_forward.1} parent=1 // pred_region
      %1643 = dma.done [#allocation4], 64
    $region33: #{laser_regression_forward.1} parent=1 // pred_fallthru
      _
    %1644 = vsyncpa [#allocation3], 1
    %1645 = vsyncpa [#allocation4], 1

</llo_original>
